<compile_context>
chip_gen: v7x
topology: tpu7x:2x2x1
jax: 0.10.0
libtpu: 0.0.40
codegen_flags: <defaults>
</compile_context>

<pallas_src>
import functools

import jax
import jax.numpy as jnp
from jax import lax
from jax.experimental import pallas as pl
from jax.experimental.pallas import tpu as pltpu


def _decoder_kernel(x_ref, w_ref, smalls_ref, bout_ref, out_ref, *,
                    seq_len, hidden):
    """Full LSTM recurrence + output reduce, everything resident in VMEM/vregs.

    x_ref      : (1, H)        decoder input row (same at every timestep)
    w_ref      : (2H, 4H)      fused [W_ih^T ; W_hh^T], i/f/o columns pre-scaled by 0.5
    smalls_ref : (2, 4H)       row 0 = (b_ih + b_hh) gate-scaled; row 1[:H] = w_out row
    bout_ref   : (1, 1) SMEM   output Linear bias (scalar)
    out_ref    : (seq_len, 1)  final output
    """
    H = hidden
    b = smalls_ref[0:1, :]          # (1, 4H) gate bias (i/f/o pre-scaled by 0.5)
    x_row = x_ref[...]              # (1, H)  constant across timesteps

    h = jnp.zeros((1, H), jnp.float32)
    c = jnp.zeros((1, H), jnp.float32)
    hs = []
    # Fully unrolled recurrence: seq_len is small and static, so static offsets
    # and cross-step scheduling visibility.  The weight slab is indexed at the
    # use site every step (cheap VMEM vld path) instead of being hoisted into a
    # 256 KiB live vreg value.
    for _ in range(seq_len):
        lhs = jnp.concatenate([x_row, h], axis=1)                  # (1, 2H)
        gates = jnp.dot(lhs, w_ref[...],
                        preferred_element_type=jnp.float32) + b    # (1, 4H)
        # One wide EUP pass over all 4 gates; sigmoid recovered from tanh
        # because i/f/o pre-activations were halved at param-prep time.
        t = jnp.tanh(gates)
        i = 0.5 * (1.0 + t[:, 0 * H:1 * H])
        f = 0.5 * (1.0 + t[:, 1 * H:2 * H])
        g = t[:, 2 * H:3 * H]
        o = 0.5 * (1.0 + t[:, 3 * H:4 * H])
        c = f * c + i * g
        h = o * jnp.tanh(c)
        hs.append(h)

    # Dropout (eval) is identity.  Output projection for input_size == 1 is a
    # VPU multiply against the lane-dense w_out row + an XLU lane reduce — no
    # N=1 MXU matvec, no lane-width-1 weight operand.
    hseq = jnp.concatenate(hs, axis=0)                             # (seq_len, H)
    wout = smalls_ref[1:2, 0:H]                                    # (1, H)
    out_ref[...] = (jnp.sum(hseq * wout, axis=-1, keepdims=True)
                    + bout_ref[0, 0])


def prepare_decoder_params(params, *, hidden_size, input_size):
    """One-time (model-load) param prep: transposes, gate scaling, slab packing.

    Hoisted out of the per-forward path so the hot loop pays no wrapper-side
    transpose/scale XLA ops.
    """
    assert input_size == 1, "the PyTorch module's reshape only supports input_size == 1"
    H = hidden_size
    # PyTorch gate order: i, f, g, o -> halve blocks 0, 1, 3 (sigmoid-via-tanh).
    gate_scale = jnp.concatenate([
        jnp.full((2 * H,), 0.5, jnp.float32),   # i, f
        jnp.ones((H,), jnp.float32),            # g (plain tanh)
        jnp.full((H,), 0.5, jnp.float32),       # o
    ])
    wih_t = params["w_ih"].T.astype(jnp.float32) * gate_scale[None, :]   # (H, 4H)
    whh_t = params["w_hh"].T.astype(jnp.float32) * gate_scale[None, :]   # (H, 4H)
    w_fused = jnp.concatenate([wih_t, whh_t], axis=0)                    # (2H, 4H)

    b = (params["b_ih"] + params["b_hh"]).astype(jnp.float32) * gate_scale   # (4H,)
    wout_row = params["w_out"].reshape(H).astype(jnp.float32)                # (H,)
    row1 = jnp.zeros((4 * H,), jnp.float32).at[:H].set(wout_row)
    smalls = jnp.stack([b, row1], axis=0)                                    # (2, 4H)

    bout = params["b_out"].reshape(1, 1).astype(jnp.float32)                 # (1, 1)
    return {"w_fused": w_fused, "smalls": smalls, "b_out": bout}


def decoder_forward(x, prepped, *, seq_len, input_size, hidden_size):
    """Hot path: only a reshape plus the pallas_call (4 small prologue DMAs)."""
    assert input_size == 1
    assert hidden_size % 128 == 0, "gate slices must stay lane-aligned (hidden % 128 == 0)"
    H = hidden_size
    # x.repeat(seq_len, input_size).reshape(input_size, seq_len, hidden) makes
    # `seq_len` identical copies of the single (hidden,) row; the kernel consumes
    # that single row and replays it every timestep.
    x_row = jnp.reshape(x, (1, H)).astype(jnp.float32)

    kernel = functools.partial(_decoder_kernel, seq_len=seq_len, hidden=H)
    vmem = pl.BlockSpec(memory_space=pltpu.MemorySpace.VMEM)
    smem = pl.BlockSpec(memory_space=pltpu.MemorySpace.SMEM)
    out = pl.pallas_call(
        kernel,
        out_shape=jax.ShapeDtypeStruct((seq_len, input_size), jnp.float32),
        in_specs=[vmem, vmem, vmem, smem],
        out_specs=vmem,
    )(x_row, prepped["w_fused"], prepped["smalls"], prepped["b_out"])
    return out


def decoder_reference(x, params, *, seq_len, input_size, hidden_size):
    """Pure-JAX reference matching PyTorch nn.LSTM + nn.Linear semantics."""
    x_row = jnp.reshape(x, (hidden_size,)).astype(jnp.float32)
    w_ih, w_hh = params["w_ih"], params["w_hh"]
    b = params["b_ih"] + params["b_hh"]
    xp = x_row @ w_ih.T + b

    def step(carry, _):
        h, c = carry
        gates = xp + h @ w_hh.T
        i, f, g, o = jnp.split(gates, 4)
        i, f, o = jax.nn.sigmoid(i), jax.nn.sigmoid(f), jax.nn.sigmoid(o)
        g = jnp.tanh(g)
        c = f * c + i * g
        h = o * jnp.tanh(c)
        return (h, c), h

    init = (jnp.zeros(hidden_size, jnp.float32), jnp.zeros(hidden_size, jnp.float32))
    _, hs = lax.scan(step, init, None, length=seq_len)
    return hs @ params["w_out"].T + params["b_out"]


def init_params(key, hidden_size, input_size):
    """Deterministic init mirroring PyTorch's uniform(-1/sqrt(H), 1/sqrt(H))."""
    k = 1.0 / jnp.sqrt(jnp.float32(hidden_size))
    keys = jax.random.split(key, 6)
    u = lambda kk, shape: jax.random.uniform(kk, shape, jnp.float32, -k, k)
    return {
        "w_ih": u(keys[0], (4 * hidden_size, hidden_size)),
        "w_hh": u(keys[1], (4 * hidden_size, hidden_size)),
        "b_ih": u(keys[2], (4 * hidden_size,)),
        "b_hh": u(keys[3], (4 * hidden_size,)),
        "w_out": u(keys[4], (input_size, hidden_size)),
        "b_out": u(keys[5], (input_size,)),
    }


if __name__ == "__main__":
    seq_len = 8
    input_size = 1
    embedding_size = 64
    hidden_size = 2 * embedding_size  # 128

    root = jax.random.PRNGKey(0)
    k_x, k_p = jax.random.split(root)
    # Decoder input: a single embedding row of width hidden_size (as forward implies).
    x = jax.random.normal(k_x, (1, hidden_size), jnp.float32)
    params = init_params(k_p, hidden_size, input_size)

    # Model-load-time prep (hoisted out of the per-forward hot path).
    prepped = prepare_decoder_params(params, hidden_size=hidden_size,
                                     input_size=input_size)
    prepped = jax.block_until_ready(prepped)

    out = decoder_forward(x, prepped, seq_len=seq_len, input_size=input_size,
                          hidden_size=hidden_size)
    out = jax.block_until_ready(out)

    ref = decoder_reference(x, params, seq_len=seq_len, input_size=input_size,
                            hidden_size=hidden_size)
    assert out.shape == (seq_len, input_size)
    # Slightly looser tol: sigmoid-via-tanh rewrite + fused 256-deep contraction
    # change ULP-level rounding inside the recurrence vs the direct reference.
    assert jnp.allclose(out, ref, atol=1e-4, rtol=1e-4), "mismatch vs JAX reference"

    print("KERNEL_OK")
</pallas_src>

<mosaic_0001>
module attributes {stable_mosaic.version = 11 : i64} {
  func.func @_decoder_kernel(%arg0: memref<1x128xf32, #tpu.memory_space<vmem>>, %arg1: memref<256x512xf32, #tpu.memory_space<vmem>>, %arg2: memref<2x512xf32, #tpu.memory_space<vmem>>, %arg3: memref<1x1xf32, #tpu.memory_space<smem>>, %arg4: memref<8x1xf32, #tpu.memory_space<vmem>>) attributes {dimension_semantics = [], scalar_prefetch = 0 : i64, scratch_operands = 0 : i64, tpu.core_type = #tpu.core_type<tc>} {
    %c0 = arith.constant 0 : index
    %c0_0 = arith.constant 0 : index
    %0 = vector.load %arg2[%c0, %c0_0] : memref<2x512xf32, #tpu.memory_space<vmem>>, vector<1x512xf32>
    %c0_1 = arith.constant 0 : index
    %c0_2 = arith.constant 0 : index
    %1 = vector.load %arg0[%c0_1, %c0_2] : memref<1x128xf32, #tpu.memory_space<vmem>>, vector<1x128xf32>
    %cst = arith.constant 0.000000e+00 : f32
    %2 = vector.broadcast %cst : f32 to vector<1x128xf32>
    %cst_3 = arith.constant 0.000000e+00 : f32
    %3 = vector.broadcast %cst_3 : f32 to vector<1x128xf32>
    %4 = tpu.concatenate %1, %2 in 1 : vector<1x128xf32>, vector<1x128xf32> -> vector<1x256xf32>
    %c0_4 = arith.constant 0 : index
    %c0_5 = arith.constant 0 : index
    %5 = vector.load %arg1[%c0_4, %c0_5] : memref<256x512xf32, #tpu.memory_space<vmem>>, vector<256x512xf32>
    %cst_6 = arith.constant dense<0.000000e+00> : vector<1x512xf32>
    %6 = tpu.matmul %4, %5, %cst_6 {dimension_numbers = #tpu.dot_dimension_numbers<[1], [0], [0], [1], [0, 0, 1, 1], [], []>} : vector<1x256xf32>, vector<256x512xf32>, vector<1x512xf32> -> vector<1x512xf32>
    %7 = arith.addf %6, %0 : vector<1x512xf32>
    %8 = math.tanh %7 : vector<1x512xf32>
    %9 = vector.extract_strided_slice %8 {offsets = [0, 0], sizes = [1, 128], strides = [1, 1]} : vector<1x512xf32> to vector<1x128xf32>
    %cst_7 = arith.constant 1.000000e+00 : f32
    %10 = vector.broadcast %cst_7 : f32 to vector<1x128xf32>
    %11 = arith.addf %10, %9 : vector<1x128xf32>
    %cst_8 = arith.constant 5.000000e-01 : f32
    %12 = vector.broadcast %cst_8 : f32 to vector<1x128xf32>
    %13 = arith.mulf %12, %11 : vector<1x128xf32>
    %14 = vector.extract_strided_slice %8 {offsets = [0, 128], sizes = [1, 128], strides = [1, 1]} : vector<1x512xf32> to vector<1x128xf32>
    %cst_9 = arith.constant 1.000000e+00 : f32
    %15 = vector.broadcast %cst_9 : f32 to vector<1x128xf32>
    %16 = arith.addf %15, %14 : vector<1x128xf32>
    %cst_10 = arith.constant 5.000000e-01 : f32
    %17 = vector.broadcast %cst_10 : f32 to vector<1x128xf32>
    %18 = arith.mulf %17, %16 : vector<1x128xf32>
    %19 = vector.extract_strided_slice %8 {offsets = [0, 256], sizes = [1, 128], strides = [1, 1]} : vector<1x512xf32> to vector<1x128xf32>
    %20 = vector.extract_strided_slice %8 {offsets = [0, 384], sizes = [1, 128], strides = [1, 1]} : vector<1x512xf32> to vector<1x128xf32>
    %cst_11 = arith.constant 1.000000e+00 : f32
    %21 = vector.broadcast %cst_11 : f32 to vector<1x128xf32>
    %22 = arith.addf %21, %20 : vector<1x128xf32>
    %cst_12 = arith.constant 5.000000e-01 : f32
    %23 = vector.broadcast %cst_12 : f32 to vector<1x128xf32>
    %24 = arith.mulf %23, %22 : vector<1x128xf32>
    %25 = arith.mulf %18, %3 : vector<1x128xf32>
    %26 = arith.mulf %13, %19 : vector<1x128xf32>
    %27 = arith.addf %25, %26 : vector<1x128xf32>
    %28 = math.tanh %27 : vector<1x128xf32>
    %29 = arith.mulf %24, %28 : vector<1x128xf32>
    %30 = tpu.concatenate %1, %29 in 1 : vector<1x128xf32>, vector<1x128xf32> -> vector<1x256xf32>
    %c0_13 = arith.constant 0 : index
    %c0_14 = arith.constant 0 : index
    %31 = vector.load %arg1[%c0_13, %c0_14] : memref<256x512xf32, #tpu.memory_space<vmem>>, vector<256x512xf32>
    %cst_15 = arith.constant dense<0.000000e+00> : vector<1x512xf32>
    %32 = tpu.matmul %30, %31, %cst_15 {dimension_numbers = #tpu.dot_dimension_numbers<[1], [0], [0], [1], [0, 0, 1, 1], [], []>} : vector<1x256xf32>, vector<256x512xf32>, vector<1x512xf32> -> vector<1x512xf32>
    %33 = arith.addf %32, %0 : vector<1x512xf32>
    %34 = math.tanh %33 : vector<1x512xf32>
    %35 = vector.extract_strided_slice %34 {offsets = [0, 0], sizes = [1, 128], strides = [1, 1]} : vector<1x512xf32> to vector<1x128xf32>
    %cst_16 = arith.constant 1.000000e+00 : f32
    %36 = vector.broadcast %cst_16 : f32 to vector<1x128xf32>
    %37 = arith.addf %36, %35 : vector<1x128xf32>
    %cst_17 = arith.constant 5.000000e-01 : f32
    %38 = vector.broadcast %cst_17 : f32 to vector<1x128xf32>
    %39 = arith.mulf %38, %37 : vector<1x128xf32>
    %40 = vector.extract_strided_slice %34 {offsets = [0, 128], sizes = [1, 128], strides = [1, 1]} : vector<1x512xf32> to vector<1x128xf32>
    %cst_18 = arith.constant 1.000000e+00 : f32
    %41 = vector.broadcast %cst_18 : f32 to vector<1x128xf32>
    %42 = arith.addf %41, %40 : vector<1x128xf32>
    %cst_19 = arith.constant 5.000000e-01 : f32
    %43 = vector.broadcast %cst_19 : f32 to vector<1x128xf32>
    %44 = arith.mulf %43, %42 : vector<1x128xf32>
    %45 = vector.extract_strided_slice %34 {offsets = [0, 256], sizes = [1, 128], strides = [1, 1]} : vector<1x512xf32> to vector<1x128xf32>
    %46 = vector.extract_strided_slice %34 {offsets = [0, 384], sizes = [1, 128], strides = [1, 1]} : vector<1x512xf32> to vector<1x128xf32>
    %cst_20 = arith.constant 1.000000e+00 : f32
    %47 = vector.broadcast %cst_20 : f32 to vector<1x128xf32>
    %48 = arith.addf %47, %46 : vector<1x128xf32>
    %cst_21 = arith.constant 5.000000e-01 : f32
    %49 = vector.broadcast %cst_21 : f32 to vector<1x128xf32>
    %50 = arith.mulf %49, %48 : vector<1x128xf32>
    %51 = arith.mulf %44, %27 : vector<1x128xf32>
    %52 = arith.mulf %39, %45 : vector<1x128xf32>
    %53 = arith.addf %51, %52 : vector<1x128xf32>
    %54 = math.tanh %53 : vector<1x128xf32>
    %55 = arith.mulf %50, %54 : vector<1x128xf32>
    %56 = tpu.concatenate %1, %55 in 1 : vector<1x128xf32>, vector<1x128xf32> -> vector<1x256xf32>
    %c0_22 = arith.constant 0 : index
    %c0_23 = arith.constant 0 : index
    %57 = vector.load %arg1[%c0_22, %c0_23] : memref<256x512xf32, #tpu.memory_space<vmem>>, vector<256x512xf32>
    %cst_24 = arith.constant dense<0.000000e+00> : vector<1x512xf32>
    %58 = tpu.matmul %56, %57, %cst_24 {dimension_numbers = #tpu.dot_dimension_numbers<[1], [0], [0], [1], [0, 0, 1, 1], [], []>} : vector<1x256xf32>, vector<256x512xf32>, vector<1x512xf32> -> vector<1x512xf32>
    %59 = arith.addf %58, %0 : vector<1x512xf32>
    %60 = math.tanh %59 : vector<1x512xf32>
    %61 = vector.extract_strided_slice %60 {offsets = [0, 0], sizes = [1, 128], strides = [1, 1]} : vector<1x512xf32> to vector<1x128xf32>
    %cst_25 = arith.constant 1.000000e+00 : f32
    %62 = vector.broadcast %cst_25 : f32 to vector<1x128xf32>
    %63 = arith.addf %62, %61 : vector<1x128xf32>
    %cst_26 = arith.constant 5.000000e-01 : f32
    %64 = vector.broadcast %cst_26 : f32 to vector<1x128xf32>
    %65 = arith.mulf %64, %63 : vector<1x128xf32>
    %66 = vector.extract_strided_slice %60 {offsets = [0, 128], sizes = [1, 128], strides = [1, 1]} : vector<1x512xf32> to vector<1x128xf32>
    %cst_27 = arith.constant 1.000000e+00 : f32
    %67 = vector.broadcast %cst_27 : f32 to vector<1x128xf32>
    %68 = arith.addf %67, %66 : vector<1x128xf32>
    %cst_28 = arith.constant 5.000000e-01 : f32
    %69 = vector.broadcast %cst_28 : f32 to vector<1x128xf32>
    %70 = arith.mulf %69, %68 : vector<1x128xf32>
    %71 = vector.extract_strided_slice %60 {offsets = [0, 256], sizes = [1, 128], strides = [1, 1]} : vector<1x512xf32> to vector<1x128xf32>
    %72 = vector.extract_strided_slice %60 {offsets = [0, 384], sizes = [1, 128], strides = [1, 1]} : vector<1x512xf32> to vector<1x128xf32>
    %cst_29 = arith.constant 1.000000e+00 : f32
    %73 = vector.broadcast %cst_29 : f32 to vector<1x128xf32>
    %74 = arith.addf %73, %72 : vector<1x128xf32>
    %cst_30 = arith.constant 5.000000e-01 : f32
    %75 = vector.broadcast %cst_30 : f32 to vector<1x128xf32>
    %76 = arith.mulf %75, %74 : vector<1x128xf32>
    %77 = arith.mulf %70, %53 : vector<1x128xf32>
    %78 = arith.mulf %65, %71 : vector<1x128xf32>
    %79 = arith.addf %77, %78 : vector<1x128xf32>
    %80 = math.tanh %79 : vector<1x128xf32>
    %81 = arith.mulf %76, %80 : vector<1x128xf32>
    %82 = tpu.concatenate %1, %81 in 1 : vector<1x128xf32>, vector<1x128xf32> -> vector<1x256xf32>
    %c0_31 = arith.constant 0 : index
    %c0_32 = arith.constant 0 : index
    %83 = vector.load %arg1[%c0_31, %c0_32] : memref<256x512xf32, #tpu.memory_space<vmem>>, vector<256x512xf32>
    %cst_33 = arith.constant dense<0.000000e+00> : vector<1x512xf32>
    %84 = tpu.matmul %82, %83, %cst_33 {dimension_numbers = #tpu.dot_dimension_numbers<[1], [0], [0], [1], [0, 0, 1, 1], [], []>} : vector<1x256xf32>, vector<256x512xf32>, vector<1x512xf32> -> vector<1x512xf32>
    %85 = arith.addf %84, %0 : vector<1x512xf32>
    %86 = math.tanh %85 : vector<1x512xf32>
    %87 = vector.extract_strided_slice %86 {offsets = [0, 0], sizes = [1, 128], strides = [1, 1]} : vector<1x512xf32> to vector<1x128xf32>
    %cst_34 = arith.constant 1.000000e+00 : f32
    %88 = vector.broadcast %cst_34 : f32 to vector<1x128xf32>
    %89 = arith.addf %88, %87 : vector<1x128xf32>
    %cst_35 = arith.constant 5.000000e-01 : f32
    %90 = vector.broadcast %cst_35 : f32 to vector<1x128xf32>
    %91 = arith.mulf %90, %89 : vector<1x128xf32>
    %92 = vector.extract_strided_slice %86 {offsets = [0, 128], sizes = [1, 128], strides = [1, 1]} : vector<1x512xf32> to vector<1x128xf32>
    %cst_36 = arith.constant 1.000000e+00 : f32
    %93 = vector.broadcast %cst_36 : f32 to vector<1x128xf32>
    %94 = arith.addf %93, %92 : vector<1x128xf32>
    %cst_37 = arith.constant 5.000000e-01 : f32
    %95 = vector.broadcast %cst_37 : f32 to vector<1x128xf32>
    %96 = arith.mulf %95, %94 : vector<1x128xf32>
    %97 = vector.extract_strided_slice %86 {offsets = [0, 256], sizes = [1, 128], strides = [1, 1]} : vector<1x512xf32> to vector<1x128xf32>
    %98 = vector.extract_strided_slice %86 {offsets = [0, 384], sizes = [1, 128], strides = [1, 1]} : vector<1x512xf32> to vector<1x128xf32>
    %cst_38 = arith.constant 1.000000e+00 : f32
    %99 = vector.broadcast %cst_38 : f32 to vector<1x128xf32>
    %100 = arith.addf %99, %98 : vector<1x128xf32>
    %cst_39 = arith.constant 5.000000e-01 : f32
    %101 = vector.broadcast %cst_39 : f32 to vector<1x128xf32>
    %102 = arith.mulf %101, %100 : vector<1x128xf32>
    %103 = arith.mulf %96, %79 : vector<1x128xf32>
    %104 = arith.mulf %91, %97 : vector<1x128xf32>
    %105 = arith.addf %103, %104 : vector<1x128xf32>
    %106 = math.tanh %105 : vector<1x128xf32>
    %107 = arith.mulf %102, %106 : vector<1x128xf32>
    %108 = tpu.concatenate %1, %107 in 1 : vector<1x128xf32>, vector<1x128xf32> -> vector<1x256xf32>
    %c0_40 = arith.constant 0 : index
    %c0_41 = arith.constant 0 : index
    %109 = vector.load %arg1[%c0_40, %c0_41] : memref<256x512xf32, #tpu.memory_space<vmem>>, vector<256x512xf32>
    %cst_42 = arith.constant dense<0.000000e+00> : vector<1x512xf32>
    %110 = tpu.matmul %108, %109, %cst_42 {dimension_numbers = #tpu.dot_dimension_numbers<[1], [0], [0], [1], [0, 0, 1, 1], [], []>} : vector<1x256xf32>, vector<256x512xf32>, vector<1x512xf32> -> vector<1x512xf32>
    %111 = arith.addf %110, %0 : vector<1x512xf32>
    %112 = math.tanh %111 : vector<1x512xf32>
    %113 = vector.extract_strided_slice %112 {offsets = [0, 0], sizes = [1, 128], strides = [1, 1]} : vector<1x512xf32> to vector<1x128xf32>
    %cst_43 = arith.constant 1.000000e+00 : f32
    %114 = vector.broadcast %cst_43 : f32 to vector<1x128xf32>
    %115 = arith.addf %114, %113 : vector<1x128xf32>
    %cst_44 = arith.constant 5.000000e-01 : f32
    %116 = vector.broadcast %cst_44 : f32 to vector<1x128xf32>
    %117 = arith.mulf %116, %115 : vector<1x128xf32>
    %118 = vector.extract_strided_slice %112 {offsets = [0, 128], sizes = [1, 128], strides = [1, 1]} : vector<1x512xf32> to vector<1x128xf32>
    %cst_45 = arith.constant 1.000000e+00 : f32
    %119 = vector.broadcast %cst_45 : f32 to vector<1x128xf32>
    %120 = arith.addf %119, %118 : vector<1x128xf32>
    %cst_46 = arith.constant 5.000000e-01 : f32
    %121 = vector.broadcast %cst_46 : f32 to vector<1x128xf32>
    %122 = arith.mulf %121, %120 : vector<1x128xf32>
    %123 = vector.extract_strided_slice %112 {offsets = [0, 256], sizes = [1, 128], strides = [1, 1]} : vector<1x512xf32> to vector<1x128xf32>
    %124 = vector.extract_strided_slice %112 {offsets = [0, 384], sizes = [1, 128], strides = [1, 1]} : vector<1x512xf32> to vector<1x128xf32>
    %cst_47 = arith.constant 1.000000e+00 : f32
    %125 = vector.broadcast %cst_47 : f32 to vector<1x128xf32>
    %126 = arith.addf %125, %124 : vector<1x128xf32>
    %cst_48 = arith.constant 5.000000e-01 : f32
    %127 = vector.broadcast %cst_48 : f32 to vector<1x128xf32>
    %128 = arith.mulf %127, %126 : vector<1x128xf32>
    %129 = arith.mulf %122, %105 : vector<1x128xf32>
    %130 = arith.mulf %117, %123 : vector<1x128xf32>
    %131 = arith.addf %129, %130 : vector<1x128xf32>
    %132 = math.tanh %131 : vector<1x128xf32>
    %133 = arith.mulf %128, %132 : vector<1x128xf32>
    %134 = tpu.concatenate %1, %133 in 1 : vector<1x128xf32>, vector<1x128xf32> -> vector<1x256xf32>
    %c0_49 = arith.constant 0 : index
    %c0_50 = arith.constant 0 : index
    %135 = vector.load %arg1[%c0_49, %c0_50] : memref<256x512xf32, #tpu.memory_space<vmem>>, vector<256x512xf32>
    %cst_51 = arith.constant dense<0.000000e+00> : vector<1x512xf32>
    %136 = tpu.matmul %134, %135, %cst_51 {dimension_numbers = #tpu.dot_dimension_numbers<[1], [0], [0], [1], [0, 0, 1, 1], [], []>} : vector<1x256xf32>, vector<256x512xf32>, vector<1x512xf32> -> vector<1x512xf32>
    %137 = arith.addf %136, %0 : vector<1x512xf32>
    %138 = math.tanh %137 : vector<1x512xf32>
    %139 = vector.extract_strided_slice %138 {offsets = [0, 0], sizes = [1, 128], strides = [1, 1]} : vector<1x512xf32> to vector<1x128xf32>
    %cst_52 = arith.constant 1.000000e+00 : f32
    %140 = vector.broadcast %cst_52 : f32 to vector<1x128xf32>
    %141 = arith.addf %140, %139 : vector<1x128xf32>
    %cst_53 = arith.constant 5.000000e-01 : f32
    %142 = vector.broadcast %cst_53 : f32 to vector<1x128xf32>
    %143 = arith.mulf %142, %141 : vector<1x128xf32>
    %144 = vector.extract_strided_slice %138 {offsets = [0, 128], sizes = [1, 128], strides = [1, 1]} : vector<1x512xf32> to vector<1x128xf32>
    %cst_54 = arith.constant 1.000000e+00 : f32
    %145 = vector.broadcast %cst_54 : f32 to vector<1x128xf32>
    %146 = arith.addf %145, %144 : vector<1x128xf32>
    %cst_55 = arith.constant 5.000000e-01 : f32
    %147 = vector.broadcast %cst_55 : f32 to vector<1x128xf32>
    %148 = arith.mulf %147, %146 : vector<1x128xf32>
    %149 = vector.extract_strided_slice %138 {offsets = [0, 256], sizes = [1, 128], strides = [1, 1]} : vector<1x512xf32> to vector<1x128xf32>
    %150 = vector.extract_strided_slice %138 {offsets = [0, 384], sizes = [1, 128], strides = [1, 1]} : vector<1x512xf32> to vector<1x128xf32>
    %cst_56 = arith.constant 1.000000e+00 : f32
    %151 = vector.broadcast %cst_56 : f32 to vector<1x128xf32>
    %152 = arith.addf %151, %150 : vector<1x128xf32>
    %cst_57 = arith.constant 5.000000e-01 : f32
    %153 = vector.broadcast %cst_57 : f32 to vector<1x128xf32>
    %154 = arith.mulf %153, %152 : vector<1x128xf32>
    %155 = arith.mulf %148, %131 : vector<1x128xf32>
    %156 = arith.mulf %143, %149 : vector<1x128xf32>
    %157 = arith.addf %155, %156 : vector<1x128xf32>
    %158 = math.tanh %157 : vector<1x128xf32>
    %159 = arith.mulf %154, %158 : vector<1x128xf32>
    %160 = tpu.concatenate %1, %159 in 1 : vector<1x128xf32>, vector<1x128xf32> -> vector<1x256xf32>
    %c0_58 = arith.constant 0 : index
    %c0_59 = arith.constant 0 : index
    %161 = vector.load %arg1[%c0_58, %c0_59] : memref<256x512xf32, #tpu.memory_space<vmem>>, vector<256x512xf32>
    %cst_60 = arith.constant dense<0.000000e+00> : vector<1x512xf32>
    %162 = tpu.matmul %160, %161, %cst_60 {dimension_numbers = #tpu.dot_dimension_numbers<[1], [0], [0], [1], [0, 0, 1, 1], [], []>} : vector<1x256xf32>, vector<256x512xf32>, vector<1x512xf32> -> vector<1x512xf32>
    %163 = arith.addf %162, %0 : vector<1x512xf32>
    %164 = math.tanh %163 : vector<1x512xf32>
    %165 = vector.extract_strided_slice %164 {offsets = [0, 0], sizes = [1, 128], strides = [1, 1]} : vector<1x512xf32> to vector<1x128xf32>
    %cst_61 = arith.constant 1.000000e+00 : f32
    %166 = vector.broadcast %cst_61 : f32 to vector<1x128xf32>
    %167 = arith.addf %166, %165 : vector<1x128xf32>
    %cst_62 = arith.constant 5.000000e-01 : f32
    %168 = vector.broadcast %cst_62 : f32 to vector<1x128xf32>
    %169 = arith.mulf %168, %167 : vector<1x128xf32>
    %170 = vector.extract_strided_slice %164 {offsets = [0, 128], sizes = [1, 128], strides = [1, 1]} : vector<1x512xf32> to vector<1x128xf32>
    %cst_63 = arith.constant 1.000000e+00 : f32
    %171 = vector.broadcast %cst_63 : f32 to vector<1x128xf32>
    %172 = arith.addf %171, %170 : vector<1x128xf32>
    %cst_64 = arith.constant 5.000000e-01 : f32
    %173 = vector.broadcast %cst_64 : f32 to vector<1x128xf32>
    %174 = arith.mulf %173, %172 : vector<1x128xf32>
    %175 = vector.extract_strided_slice %164 {offsets = [0, 256], sizes = [1, 128], strides = [1, 1]} : vector<1x512xf32> to vector<1x128xf32>
    %176 = vector.extract_strided_slice %164 {offsets = [0, 384], sizes = [1, 128], strides = [1, 1]} : vector<1x512xf32> to vector<1x128xf32>
    %cst_65 = arith.constant 1.000000e+00 : f32
    %177 = vector.broadcast %cst_65 : f32 to vector<1x128xf32>
    %178 = arith.addf %177, %176 : vector<1x128xf32>
    %cst_66 = arith.constant 5.000000e-01 : f32
    %179 = vector.broadcast %cst_66 : f32 to vector<1x128xf32>
    %180 = arith.mulf %179, %178 : vector<1x128xf32>
    %181 = arith.mulf %174, %157 : vector<1x128xf32>
    %182 = arith.mulf %169, %175 : vector<1x128xf32>
    %183 = arith.addf %181, %182 : vector<1x128xf32>
    %184 = math.tanh %183 : vector<1x128xf32>
    %185 = arith.mulf %180, %184 : vector<1x128xf32>
    %186 = tpu.concatenate %1, %185 in 1 : vector<1x128xf32>, vector<1x128xf32> -> vector<1x256xf32>
    %c0_67 = arith.constant 0 : index
    %c0_68 = arith.constant 0 : index
    %187 = vector.load %arg1[%c0_67, %c0_68] : memref<256x512xf32, #tpu.memory_space<vmem>>, vector<256x512xf32>
    %cst_69 = arith.constant dense<0.000000e+00> : vector<1x512xf32>
    %188 = tpu.matmul %186, %187, %cst_69 {dimension_numbers = #tpu.dot_dimension_numbers<[1], [0], [0], [1], [0, 0, 1, 1], [], []>} : vector<1x256xf32>, vector<256x512xf32>, vector<1x512xf32> -> vector<1x512xf32>
    %189 = arith.addf %188, %0 : vector<1x512xf32>
    %190 = math.tanh %189 : vector<1x512xf32>
    %191 = vector.extract_strided_slice %190 {offsets = [0, 0], sizes = [1, 128], strides = [1, 1]} : vector<1x512xf32> to vector<1x128xf32>
    %cst_70 = arith.constant 1.000000e+00 : f32
    %192 = vector.broadcast %cst_70 : f32 to vector<1x128xf32>
    %193 = arith.addf %192, %191 : vector<1x128xf32>
    %cst_71 = arith.constant 5.000000e-01 : f32
    %194 = vector.broadcast %cst_71 : f32 to vector<1x128xf32>
    %195 = arith.mulf %194, %193 : vector<1x128xf32>
    %196 = vector.extract_strided_slice %190 {offsets = [0, 128], sizes = [1, 128], strides = [1, 1]} : vector<1x512xf32> to vector<1x128xf32>
    %cst_72 = arith.constant 1.000000e+00 : f32
    %197 = vector.broadcast %cst_72 : f32 to vector<1x128xf32>
    %198 = arith.addf %197, %196 : vector<1x128xf32>
    %cst_73 = arith.constant 5.000000e-01 : f32
    %199 = vector.broadcast %cst_73 : f32 to vector<1x128xf32>
    %200 = arith.mulf %199, %198 : vector<1x128xf32>
    %201 = vector.extract_strided_slice %190 {offsets = [0, 256], sizes = [1, 128], strides = [1, 1]} : vector<1x512xf32> to vector<1x128xf32>
    %202 = vector.extract_strided_slice %190 {offsets = [0, 384], sizes = [1, 128], strides = [1, 1]} : vector<1x512xf32> to vector<1x128xf32>
    %cst_74 = arith.constant 1.000000e+00 : f32
    %203 = vector.broadcast %cst_74 : f32 to vector<1x128xf32>
    %204 = arith.addf %203, %202 : vector<1x128xf32>
    %cst_75 = arith.constant 5.000000e-01 : f32
    %205 = vector.broadcast %cst_75 : f32 to vector<1x128xf32>
    %206 = arith.mulf %205, %204 : vector<1x128xf32>
    %207 = arith.mulf %200, %183 : vector<1x128xf32>
    %208 = arith.mulf %195, %201 : vector<1x128xf32>
    %209 = arith.addf %207, %208 : vector<1x128xf32>
    %210 = math.tanh %209 : vector<1x128xf32>
    %211 = arith.mulf %206, %210 : vector<1x128xf32>
    %212 = tpu.concatenate %29, %55, %81, %107, %133, %159, %185, %211 in 0 : vector<1x128xf32>, vector<1x128xf32>, vector<1x128xf32>, vector<1x128xf32>, vector<1x128xf32>, vector<1x128xf32>, vector<1x128xf32>, vector<1x128xf32> -> vector<8x128xf32>
    %c1 = arith.constant 1 : index
    %c0_76 = arith.constant 0 : index
    %213 = vector.load %arg2[%c1, %c0_76] : memref<2x512xf32, #tpu.memory_space<vmem>>, vector<1x128xf32>
    %214 = vector.broadcast %213 : vector<1x128xf32> to vector<8x128xf32>
    %215 = arith.mulf %212, %214 : vector<8x128xf32>
    %cst_77 = arith.constant dense<0.000000e+00> : vector<8xf32>
    %216 = vector.multi_reduction <add>, %215, %cst_77 [1] : vector<8x128xf32> to vector<8xf32>
    %217 = vector.shape_cast %216 : vector<8xf32> to vector<8x1xf32>
    %c0_78 = arith.constant 0 : index
    %c0_79 = arith.constant 0 : index
    %218 = memref.load %arg3[%c0_78, %c0_79] : memref<1x1xf32, #tpu.memory_space<smem>>
    %219 = vector.broadcast %218 : f32 to vector<8x1xf32>
    %220 = arith.addf %217, %219 : vector<8x1xf32>
    %c0_80 = arith.constant 0 : index
    %c0_81 = arith.constant 0 : index
    %221 = vector.load %arg4[%c0_80, %c0_81] : memref<8x1xf32, #tpu.memory_space<vmem>>, vector<8x1xf32>
    tpu.vector_store %arg4[%c0_80, %c0_81], %220 {strides = array<i32>} : memref<8x1xf32, #tpu.memory_space<vmem>>, vector<8x1xf32>,
    return
  }
}

</mosaic_0001>

<llo_original>
// kernel: tpu_custom_call.1
$region0: #{tpu_custom_call.1}
  #allocation0 [shape = 'u32[]', space=smem, size = 0x4, offset = 0x4, fixed_abs, tag = 'smem constant byte address 0x4 - core index']
  #allocation1 [shape = 'u32[144,128]{1,0:T(1,128)}', space=vmem, size = 0x12000, scoped, tag = 'internal scratch']
  #allocation2 [shape = 'f32[1,1]{1,0:T(1,128)S(6)}', space=smem, size = 0x200, scoped, tag = 'scoped memory for tpu_custom_call.1']
  %s0 = inlined_call_operand.vmem [shape: f32[1,128], index: 0, kind: input, shape index: {}]
  %s1 = inlined_call_operand.hbm [shape: f32[256,512], index: 1, kind: input, shape index: {}]
  %s2 = inlined_call_operand.vmem [shape: f32[2,512], index: 2, kind: input, shape index: {}]
  %s3 = inlined_call_operand.<no memory space> [shape: f32[1,1], index: 3, kind: input, shape index: {}]
  %s4 = inlined_call_operand.vmem [shape: f32[8,1], index: 4, kind: output, shape index: {}]
  %s5 = sld [smem:[#allocation0]]
  $region30: #{tpu_custom_call.1} parent=0
    _
  %s7 = ssub.s32 1, %s5
  %s8 = scalar_select 0, %s7, %s5
  %9 = sst [smem:[#allocation2]] %s3
  $region1: #{tpu_custom_call.1} parent=0
    #allocation3 [shape = 'u8[524288]{0}', space=vmem, size = 0x80000, scoped, tag = 'input window, operand 1, single buffered']
    #allocation4 [shape = 's32[1]{0}', space=sflag, size = 0x4, scoped, tag = 'scoped memory for tpu_custom_call.1']
    %10 = vsyncpa [#allocation4], 0
    // Predicated region
    $region2: #{tpu_custom_call.1} parent=1 // pred_check
      _
    $region3: #{tpu_custom_call.1} parent=1 // pred_check_branch
      %12 = sbr.rel (0) target = $region5
    $region4: #{tpu_custom_call.1} parent=1 // pred_region
      _
    $region5: #{tpu_custom_call.1} parent=1 // pred_fallthru
      _
    // Predicated region
    $region6: #{tpu_custom_call.1} parent=1 // pred_check
      _
    $region7: #{tpu_custom_call.1} parent=1 // pred_check_branch
      %14 = sbr.rel (0) target = $region9
    $region8: #{tpu_custom_call.1} parent=1 // pred_region
      %s16 = ssub.s32 16384, 16384
      %17 = vsyncadd [#allocation4], %s16
      %s18 = sshll.u32 [#allocation3], 4
      %s19 = int_to_ptr.vmem [resolvable:$true] %s18
      %24 = dma.hbm_to_vmem [thread:$0]  %s1, 16384, %s19, [#allocation4], 512, 512, 32
    $region9: #{tpu_custom_call.1} parent=1 // pred_fallthru
      _
    // Predicated region
    $region10: #{tpu_custom_call.1} parent=1 // pred_check
      _
    $region11: #{tpu_custom_call.1} parent=1 // pred_check_branch
      %26 = sbr.rel (0) target = $region13
    $region12: #{tpu_custom_call.1} parent=1 // pred_region
      _
    $region13: #{tpu_custom_call.1} parent=1 // pred_fallthru
      _
    // Predicated region
    $region14: #{tpu_custom_call.1} parent=1 // pred_check
      _
    $region15: #{tpu_custom_call.1} parent=1 // pred_check_branch
      %28 = sbr.rel (0) target = $region17
    $region16: #{tpu_custom_call.1} parent=1 // pred_region
      _
    $region17: #{tpu_custom_call.1} parent=1 // pred_fallthru
      _
    // Predicated region
    $region18: #{tpu_custom_call.1} parent=1 // pred_check
      _
    $region19: #{tpu_custom_call.1} parent=1 // pred_check_branch
      %30 = sbr.rel (0) target = $region21
    $region20: #{tpu_custom_call.1} parent=1 // pred_region
      %31 = dma.done [#allocation4], 16384
    $region21: #{tpu_custom_call.1} parent=1 // pred_fallthru
      _
    %v32 = vld [vmem:[%s2] ss:$2 sm:$0xf]
    %v33 = vld [vmem:[%s0] sm:$0x1]
    %v34 = vld [vmem:[#allocation3] sm:$0xff]
    %v35 = vld [vmem:[#allocation3 + $0x8] sm:$0xff]
    %v36 = vld [vmem:[#allocation3 + $0x10] sm:$0xff]
    %v37 = vld [vmem:[#allocation3 + $0x18] sm:$0xff]
    %v38 = vld [vmem:[#allocation3 + $0x20] sm:$0xff]
    %v39 = vld [vmem:[#allocation3 + $0x28] sm:$0xff]
    %v40 = vld [vmem:[#allocation3 + $0x30] sm:$0xff]
    %v41 = vld [vmem:[#allocation3 + $0x38] sm:$0xff]
    %v42 = vld [vmem:[#allocation3 + $0x40] sm:$0xff]
    %v43 = vld [vmem:[#allocation3 + $0x48] sm:$0xff]
    %v44 = vld [vmem:[#allocation3 + $0x50] sm:$0xff]
    %v45 = vld [vmem:[#allocation3 + $0x58] sm:$0xff]
    %v46 = vld [vmem:[#allocation3 + $0x60] sm:$0xff]
    %v47 = vld [vmem:[#allocation3 + $0x68] sm:$0xff]
    %v48 = vld [vmem:[#allocation3 + $0x70] sm:$0xff]
    %v49 = vld [vmem:[#allocation3 + $0x78] sm:$0xff]
    %v50 = vld [vmem:[#allocation3 + $0x80] sm:$0xff]
    %v51 = vld [vmem:[#allocation3 + $0x88] sm:$0xff]
    %v52 = vld [vmem:[#allocation3 + $0x90] sm:$0xff]
    %v53 = vld [vmem:[#allocation3 + $0x98] sm:$0xff]
    %v54 = vld [vmem:[#allocation3 + $0xa0] sm:$0xff]
    %v55 = vld [vmem:[#allocation3 + $0xa8] sm:$0xff]
    %v56 = vld [vmem:[#allocation3 + $0xb0] sm:$0xff]
    %v57 = vld [vmem:[#allocation3 + $0xb8] sm:$0xff]
    %v58 = vld [vmem:[#allocation3 + $0xc0] sm:$0xff]
    %v59 = vld [vmem:[#allocation3 + $0xc8] sm:$0xff]
    %v60 = vld [vmem:[#allocation3 + $0xd0] sm:$0xff]
    %v61 = vld [vmem:[#allocation3 + $0xd8] sm:$0xff]
    %v62 = vld [vmem:[#allocation3 + $0xe0] sm:$0xff]
    %v63 = vld [vmem:[#allocation3 + $0xe8] sm:$0xff]
    %v64 = vld [vmem:[#allocation3 + $0xf0] sm:$0xff]
    %v65 = vld [vmem:[#allocation3 + $0xf8] sm:$0xff]
    %v66 = vld [vmem:[#allocation3 + $0x100] sm:$0xff]
    %v67 = vld [vmem:[#allocation3 + $0x108] sm:$0xff]
    %v68 = vld [vmem:[#allocation3 + $0x110] sm:$0xff]
    %v69 = vld [vmem:[#allocation3 + $0x118] sm:$0xff]
    %v70 = vld [vmem:[#allocation3 + $0x120] sm:$0xff]
    %v71 = vld [vmem:[#allocation3 + $0x128] sm:$0xff]
    %v72 = vld [vmem:[#allocation3 + $0x130] sm:$0xff]
    %v73 = vld [vmem:[#allocation3 + $0x138] sm:$0xff]
    %v74 = vld [vmem:[#allocation3 + $0x140] sm:$0xff]
    %v75 = vld [vmem:[#allocation3 + $0x148] sm:$0xff]
    %v76 = vld [vmem:[#allocation3 + $0x150] sm:$0xff]
    %v77 = vld [vmem:[#allocation3 + $0x158] sm:$0xff]
    %v78 = vld [vmem:[#allocation3 + $0x160] sm:$0xff]
    %v79 = vld [vmem:[#allocation3 + $0x168] sm:$0xff]
    %v80 = vld [vmem:[#allocation3 + $0x170] sm:$0xff]
    %v81 = vld [vmem:[#allocation3 + $0x178] sm:$0xff]
    %v82 = vld [vmem:[#allocation3 + $0x180] sm:$0xff]
    %v83 = vld [vmem:[#allocation3 + $0x188] sm:$0xff]
    %v84 = vld [vmem:[#allocation3 + $0x190] sm:$0xff]
    %v85 = vld [vmem:[#allocation3 + $0x198] sm:$0xff]
    %v86 = vld [vmem:[#allocation3 + $0x1a0] sm:$0xff]
    %v87 = vld [vmem:[#allocation3 + $0x1a8] sm:$0xff]
    %v88 = vld [vmem:[#allocation3 + $0x1b0] sm:$0xff]
    %v89 = vld [vmem:[#allocation3 + $0x1b8] sm:$0xff]
    %v90 = vld [vmem:[#allocation3 + $0x1c0] sm:$0xff]
    %v91 = vld [vmem:[#allocation3 + $0x1c8] sm:$0xff]
    %v92 = vld [vmem:[#allocation3 + $0x1d0] sm:$0xff]
    %v93 = vld [vmem:[#allocation3 + $0x1d8] sm:$0xff]
    %v94 = vld [vmem:[#allocation3 + $0x1e0] sm:$0xff]
    %v95 = vld [vmem:[#allocation3 + $0x1e8] sm:$0xff]
    %v96 = vld [vmem:[#allocation3 + $0x1f0] sm:$0xff]
    %v97 = vld [vmem:[#allocation3 + $0x1f8] sm:$0xff]
    %v98 = vld [vmem:[#allocation3 + $0x200] sm:$0xff]
    %v99 = vld [vmem:[#allocation3 + $0x208] sm:$0xff]
    %v100 = vld [vmem:[#allocation3 + $0x210] sm:$0xff]
    %v101 = vld [vmem:[#allocation3 + $0x218] sm:$0xff]
    %v102 = vld [vmem:[#allocation3 + $0x220] sm:$0xff]
    %v103 = vld [vmem:[#allocation3 + $0x228] sm:$0xff]
    %v104 = vld [vmem:[#allocation3 + $0x230] sm:$0xff]
    %v105 = vld [vmem:[#allocation3 + $0x238] sm:$0xff]
    %v106 = vld [vmem:[#allocation3 + $0x240] sm:$0xff]
    %v107 = vld [vmem:[#allocation3 + $0x248] sm:$0xff]
    %v108 = vld [vmem:[#allocation3 + $0x250] sm:$0xff]
    %v109 = vld [vmem:[#allocation3 + $0x258] sm:$0xff]
    %v110 = vld [vmem:[#allocation3 + $0x260] sm:$0xff]
    %v111 = vld [vmem:[#allocation3 + $0x268] sm:$0xff]
    %v112 = vld [vmem:[#allocation3 + $0x270] sm:$0xff]
    %v113 = vld [vmem:[#allocation3 + $0x278] sm:$0xff]
    %v114 = vld [vmem:[#allocation3 + $0x280] sm:$0xff]
    %v115 = vld [vmem:[#allocation3 + $0x288] sm:$0xff]
    %v116 = vld [vmem:[#allocation3 + $0x290] sm:$0xff]
    %v117 = vld [vmem:[#allocation3 + $0x298] sm:$0xff]
    %v118 = vld [vmem:[#allocation3 + $0x2a0] sm:$0xff]
    %v119 = vld [vmem:[#allocation3 + $0x2a8] sm:$0xff]
    %v120 = vld [vmem:[#allocation3 + $0x2b0] sm:$0xff]
    %v121 = vld [vmem:[#allocation3 + $0x2b8] sm:$0xff]
    %v122 = vld [vmem:[#allocation3 + $0x2c0] sm:$0xff]
    %v123 = vld [vmem:[#allocation3 + $0x2c8] sm:$0xff]
    %v124 = vld [vmem:[#allocation3 + $0x2d0] sm:$0xff]
    %v125 = vld [vmem:[#allocation3 + $0x2d8] sm:$0xff]
    %v126 = vld [vmem:[#allocation3 + $0x2e0] sm:$0xff]
    %v127 = vld [vmem:[#allocation3 + $0x2e8] sm:$0xff]
    %v128 = vld [vmem:[#allocation3 + $0x2f0] sm:$0xff]
    %v129 = vld [vmem:[#allocation3 + $0x2f8] sm:$0xff]
    %v130 = vld [vmem:[#allocation3 + $0x300] sm:$0xff]
    %v131 = vld [vmem:[#allocation3 + $0x308] sm:$0xff]
    %v132 = vld [vmem:[#allocation3 + $0x310] sm:$0xff]
    %v133 = vld [vmem:[#allocation3 + $0x318] sm:$0xff]
    %v134 = vld [vmem:[#allocation3 + $0x320] sm:$0xff]
    %v135 = vld [vmem:[#allocation3 + $0x328] sm:$0xff]
    %v136 = vld [vmem:[#allocation3 + $0x330] sm:$0xff]
    %v137 = vld [vmem:[#allocation3 + $0x338] sm:$0xff]
    %v138 = vld [vmem:[#allocation3 + $0x340] sm:$0xff]
    %v139 = vld [vmem:[#allocation3 + $0x348] sm:$0xff]
    %v140 = vld [vmem:[#allocation3 + $0x350] sm:$0xff]
    %v141 = vld [vmem:[#allocation3 + $0x358] sm:$0xff]
    %v142 = vld [vmem:[#allocation3 + $0x360] sm:$0xff]
    %v143 = vld [vmem:[#allocation3 + $0x368] sm:$0xff]
    %v144 = vld [vmem:[#allocation3 + $0x370] sm:$0xff]
    %v145 = vld [vmem:[#allocation3 + $0x378] sm:$0xff]
    %v146 = vld [vmem:[#allocation3 + $0x380] sm:$0xff]
    %v147 = vld [vmem:[#allocation3 + $0x388] sm:$0xff]
    %v148 = vld [vmem:[#allocation3 + $0x390] sm:$0xff]
    %v149 = vld [vmem:[#allocation3 + $0x398] sm:$0xff]
    %v150 = vld [vmem:[#allocation3 + $0x3a0] sm:$0xff]
    %v151 = vld [vmem:[#allocation3 + $0x3a8] sm:$0xff]
    %v152 = vld [vmem:[#allocation3 + $0x3b0] sm:$0xff]
    %v153 = vld [vmem:[#allocation3 + $0x3b8] sm:$0xff]
    %v154 = vld [vmem:[#allocation3 + $0x3c0] sm:$0xff]
    %v155 = vld [vmem:[#allocation3 + $0x3c8] sm:$0xff]
    %v156 = vld [vmem:[#allocation3 + $0x3d0] sm:$0xff]
    %v157 = vld [vmem:[#allocation3 + $0x3d8] sm:$0xff]
    %v158 = vld [vmem:[#allocation3 + $0x3e0] sm:$0xff]
    %v159 = vld [vmem:[#allocation3 + $0x3e8] sm:$0xff]
    %v160 = vld [vmem:[#allocation3 + $0x3f0] sm:$0xff]
    %v161 = vld [vmem:[#allocation3 + $0x3f8] sm:$0xff]
    %v163 = vlaneseq
    %v164 = vshrl.u32 %v163, 7
    %v165 = vsub.s32 0, %v164
    %v166 = vrot.slane %v32, %v165
    %v167 = vlaneseq
    %v168 = vshrl.u32 %v167, 7
    %v169 = vsub.s32 1, %v168
    %v170 = vrot.slane %v32, %v169
    %v171 = vlaneseq
    %v172 = vshrl.u32 %v171, 7
    %v173 = vsub.s32 2, %v172
    %v174 = vrot.slane %v32, %v173
    %v175 = vlaneseq
    %v176 = vshrl.u32 %v175, 7
    %v177 = vsub.s32 3, %v176
    %v178 = vrot.slane %v32, %v177
    %183 = vmatprep.subr.mxu0 %v35
    %184 = vmatpush1.msra.mxu0 %v34
    %185 = vmatprep.subr.mxu0 %v39
    %186 = vmatpush1.msra.mxu0 %v38
    %187 = vmatprep.subr.mxu0 %v43
    %188 = vmatpush1.msra.mxu0 %v42
    %189 = vmatprep.subr.mxu0 %v47
    %190 = vmatpush1.msra.mxu0 %v46
    %191 = vmatprep.subr.mxu0 %v51
    %192 = vmatpush1.msra.mxu0 %v50
    %193 = vmatprep.subr.mxu0 %v55
    %194 = vmatpush1.msra.mxu0 %v54
    %195 = vmatprep.subr.mxu0 %v59
    %196 = vmatpush1.msra.mxu0 %v58
    %197 = vmatprep.subr.mxu0 %v63
    %198 = vmatpush1.msra.mxu0 %v62
    %199 = vmatprep.subr.mxu0 %v67
    %200 = vmatpush1.msra.mxu0 %v66
    %201 = vmatprep.subr.mxu0 %v71
    %202 = vmatpush1.msra.mxu0 %v70
    %203 = vmatprep.subr.mxu0 %v75
    %204 = vmatpush1.msra.mxu0 %v74
    %205 = vmatprep.subr.mxu0 %v79
    %206 = vmatpush1.msra.mxu0 %v78
    %207 = vmatprep.subr.mxu0 %v83
    %208 = vmatpush1.msra.mxu0 %v82
    %209 = vmatprep.subr.mxu0 %v87
    %210 = vmatpush1.msra.mxu0 %v86
    %211 = vmatprep.subr.mxu0 %v91
    %212 = vmatpush1.msra.mxu0 %v90
    %213 = vmatprep.subr.mxu0 %v95
    %214 = vmatpush1.msra.mxu0 %v94
    %215 = vmatprep.subr.mxu0 %v99
    %216 = vmatpush1.msra.mxu0 %v98
    %217 = vmatprep.subr.mxu0 %v103
    %218 = vmatpush1.msra.mxu0 %v102
    %219 = vmatprep.subr.mxu0 %v107
    %220 = vmatpush1.msra.mxu0 %v106
    %221 = vmatprep.subr.mxu0 %v111
    %222 = vmatpush1.msra.mxu0 %v110
    %223 = vmatprep.subr.mxu0 %v115
    %224 = vmatpush1.msra.mxu0 %v114
    %225 = vmatprep.subr.mxu0 %v119
    %226 = vmatpush1.msra.mxu0 %v118
    %227 = vmatprep.subr.mxu0 %v123
    %228 = vmatpush1.msra.mxu0 %v122
    %229 = vmatprep.subr.mxu0 %v127
    %230 = vmatpush1.msra.mxu0 %v126
    %231 = vmatprep.subr.mxu0 %v131
    %232 = vmatpush1.msra.mxu0 %v130
    %233 = vmatprep.subr.mxu0 %v135
    %234 = vmatpush1.msra.mxu0 %v134
    %235 = vmatprep.subr.mxu0 %v139
    %236 = vmatpush1.msra.mxu0 %v138
    %237 = vmatprep.subr.mxu0 %v143
    %238 = vmatpush1.msra.mxu0 %v142
    %239 = vmatprep.subr.mxu0 %v147
    %240 = vmatpush1.msra.mxu0 %v146
    %241 = vmatprep.subr.mxu0 %v151
    %242 = vmatpush1.msra.mxu0 %v150
    %243 = vmatprep.subr.mxu0 %v155
    %244 = vmatpush1.msra.mxu0 %v154
    %245 = vmatprep.subr.mxu0 %v159
    %246 = vmatpush1.msra.mxu0 %v158
    %247 = vmatprep.mubr.f32.mxu0 0.0
    %248 = vmatmul.mubr.f32.gmra.mrb[0].mxu0 %v33
    %v249 = vpop.f32.mrb[0].mxu0
    %v250 = vadd.f32 %v166, %v249
    %v251 = vpop.f32.mrb[0].mxu0
    %v252 = vadd.f32 %v170, %v251
    %253 = vdwg.mxu0
    %254 = vmatprep.subr.mxu0 %v37
    %255 = vmatpush1.msra.mxu0 %v36
    %256 = vmatprep.subr.mxu0 %v41
    %257 = vmatpush1.msra.mxu0 %v40
    %258 = vmatprep.subr.mxu0 %v45
    %259 = vmatpush1.msra.mxu0 %v44
    %260 = vmatprep.subr.mxu0 %v49
    %261 = vmatpush1.msra.mxu0 %v48
    %262 = vmatprep.subr.mxu0 %v53
    %263 = vmatpush1.msra.mxu0 %v52
    %264 = vmatprep.subr.mxu0 %v57
    %265 = vmatpush1.msra.mxu0 %v56
    %266 = vmatprep.subr.mxu0 %v61
    %267 = vmatpush1.msra.mxu0 %v60
    %268 = vmatprep.subr.mxu0 %v65
    %269 = vmatpush1.msra.mxu0 %v64
    %270 = vmatprep.subr.mxu0 %v69
    %271 = vmatpush1.msra.mxu0 %v68
    %272 = vmatprep.subr.mxu0 %v73
    %273 = vmatpush1.msra.mxu0 %v72
    %274 = vmatprep.subr.mxu0 %v77
    %275 = vmatpush1.msra.mxu0 %v76
    %276 = vmatprep.subr.mxu0 %v81
    %277 = vmatpush1.msra.mxu0 %v80
    %278 = vmatprep.subr.mxu0 %v85
    %279 = vmatpush1.msra.mxu0 %v84
    %280 = vmatprep.subr.mxu0 %v89
    %281 = vmatpush1.msra.mxu0 %v88
    %282 = vmatprep.subr.mxu0 %v93
    %283 = vmatpush1.msra.mxu0 %v92
    %284 = vmatprep.subr.mxu0 %v97
    %285 = vmatpush1.msra.mxu0 %v96
    %286 = vmatprep.subr.mxu0 %v101
    %287 = vmatpush1.msra.mxu0 %v100
    %288 = vmatprep.subr.mxu0 %v105
    %289 = vmatpush1.msra.mxu0 %v104
    %290 = vmatprep.subr.mxu0 %v109
    %291 = vmatpush1.msra.mxu0 %v108
    %292 = vmatprep.subr.mxu0 %v113
    %293 = vmatpush1.msra.mxu0 %v112
    %294 = vmatprep.subr.mxu0 %v117
    %295 = vmatpush1.msra.mxu0 %v116
    %296 = vmatprep.subr.mxu0 %v121
    %297 = vmatpush1.msra.mxu0 %v120
    %298 = vmatprep.subr.mxu0 %v125
    %299 = vmatpush1.msra.mxu0 %v124
    %300 = vmatprep.subr.mxu0 %v129
    %301 = vmatpush1.msra.mxu0 %v128
    %302 = vmatprep.subr.mxu0 %v133
    %303 = vmatpush1.msra.mxu0 %v132
    %304 = vmatprep.subr.mxu0 %v137
    %305 = vmatpush1.msra.mxu0 %v136
    %306 = vmatprep.subr.mxu0 %v141
    %307 = vmatpush1.msra.mxu0 %v140
    %308 = vmatprep.subr.mxu0 %v145
    %309 = vmatpush1.msra.mxu0 %v144
    %310 = vmatprep.subr.mxu0 %v149
    %311 = vmatpush1.msra.mxu0 %v148
    %312 = vmatprep.subr.mxu0 %v153
    %313 = vmatpush1.msra.mxu0 %v152
    %314 = vmatprep.subr.mxu0 %v157
    %315 = vmatpush1.msra.mxu0 %v156
    %316 = vmatprep.subr.mxu0 %v161
    %317 = vmatpush1.msra.mxu0 %v160
    %318 = vmatprep.mubr.f32.mxu0 0.0
    %319 = vmatmul.mubr.f32.gmra.mrb[0].mxu0 %v33
    %v320 = vpop.f32.mrb[0].mxu0
    %v321 = vadd.f32 %v174, %v320
    %v322 = vpop.f32.mrb[0].mxu0
    %v323 = vadd.f32 %v178, %v322
    %324 = vdwg.mxu0
    %v325 = vtanh.pop %v250
    %v326 = vtanh.pop %v252
    %v327 = vtanh.pop %v321
    %v328 = vtanh.pop %v323
    %v329 = vadd.f32 %v325, 1.0
    %v330 = vmul.f32 %v329, 0.5
    %v331 = vadd.f32 %v326, 1.0
    %v332 = vmul.f32 %v331, 0.5
    %v333 = vadd.f32 %v328, 1.0
    %v334 = vmul.f32 %v333, 0.5
    %v335 = vmul.f32 %v332, 0.0
    %v336 = vmul.f32 %v330, %v327
    %v337 = vadd.f32 %v335, %v336
    %v338 = vtanh.pop %v337
    %v339 = vmul.f32 %v334, %v338
    %340 = vmatprep.subr.mxu0 %v35
    %341 = vmatpush1.msra.mxu0 %v34
    %342 = vmatprep.subr.mxu0 %v39
    %343 = vmatpush1.msra.mxu0 %v38
    %344 = vmatprep.subr.mxu0 %v43
    %345 = vmatpush1.msra.mxu0 %v42
    %346 = vmatprep.subr.mxu0 %v47
    %347 = vmatpush1.msra.mxu0 %v46
    %348 = vmatprep.subr.mxu0 %v51
    %349 = vmatpush1.msra.mxu0 %v50
    %350 = vmatprep.subr.mxu0 %v55
    %351 = vmatpush1.msra.mxu0 %v54
    %352 = vmatprep.subr.mxu0 %v59
    %353 = vmatpush1.msra.mxu0 %v58
    %354 = vmatprep.subr.mxu0 %v63
    %355 = vmatpush1.msra.mxu0 %v62
    %356 = vmatprep.subr.mxu0 %v67
    %357 = vmatpush1.msra.mxu0 %v66
    %358 = vmatprep.subr.mxu0 %v71
    %359 = vmatpush1.msra.mxu0 %v70
    %360 = vmatprep.subr.mxu0 %v75
    %361 = vmatpush1.msra.mxu0 %v74
    %362 = vmatprep.subr.mxu0 %v79
    %363 = vmatpush1.msra.mxu0 %v78
    %364 = vmatprep.subr.mxu0 %v83
    %365 = vmatpush1.msra.mxu0 %v82
    %366 = vmatprep.subr.mxu0 %v87
    %367 = vmatpush1.msra.mxu0 %v86
    %368 = vmatprep.subr.mxu0 %v91
    %369 = vmatpush1.msra.mxu0 %v90
    %370 = vmatprep.subr.mxu0 %v95
    %371 = vmatpush1.msra.mxu0 %v94
    %372 = vmatprep.subr.mxu0 %v99
    %373 = vmatpush1.msra.mxu0 %v98
    %374 = vmatprep.subr.mxu0 %v103
    %375 = vmatpush1.msra.mxu0 %v102
    %376 = vmatprep.subr.mxu0 %v107
    %377 = vmatpush1.msra.mxu0 %v106
    %378 = vmatprep.subr.mxu0 %v111
    %379 = vmatpush1.msra.mxu0 %v110
    %380 = vmatprep.subr.mxu0 %v115
    %381 = vmatpush1.msra.mxu0 %v114
    %382 = vmatprep.subr.mxu0 %v119
    %383 = vmatpush1.msra.mxu0 %v118
    %384 = vmatprep.subr.mxu0 %v123
    %385 = vmatpush1.msra.mxu0 %v122
    %386 = vmatprep.subr.mxu0 %v127
    %387 = vmatpush1.msra.mxu0 %v126
    %388 = vmatprep.subr.mxu0 %v131
    %389 = vmatpush1.msra.mxu0 %v130
    %390 = vmatprep.subr.mxu0 %v135
    %391 = vmatpush1.msra.mxu0 %v134
    %392 = vmatprep.subr.mxu0 %v139
    %393 = vmatpush1.msra.mxu0 %v138
    %394 = vmatprep.subr.mxu0 %v143
    %395 = vmatpush1.msra.mxu0 %v142
    %396 = vmatprep.subr.mxu0 %v147
    %397 = vmatpush1.msra.mxu0 %v146
    %398 = vmatprep.subr.mxu0 %v151
    %399 = vmatpush1.msra.mxu0 %v150
    %400 = vmatprep.subr.mxu0 %v155
    %401 = vmatpush1.msra.mxu0 %v154
    %402 = vmatprep.subr.mxu0 %v159
    %403 = vmatpush1.msra.mxu0 %v158
    %404 = vmatprep.mubr.f32.mxu0 %v339
    %405 = vmatmul.mubr.f32.gmra.mrb[0].mxu0 %v33
    %v406 = vpop.f32.mrb[0].mxu0
    %v407 = vadd.f32 %v166, %v406
    %v408 = vpop.f32.mrb[0].mxu0
    %v409 = vadd.f32 %v170, %v408
    %410 = vdwg.mxu0
    %411 = vmatprep.subr.mxu0 %v37
    %412 = vmatpush1.msra.mxu0 %v36
    %413 = vmatprep.subr.mxu0 %v41
    %414 = vmatpush1.msra.mxu0 %v40
    %415 = vmatprep.subr.mxu0 %v45
    %416 = vmatpush1.msra.mxu0 %v44
    %417 = vmatprep.subr.mxu0 %v49
    %418 = vmatpush1.msra.mxu0 %v48
    %419 = vmatprep.subr.mxu0 %v53
    %420 = vmatpush1.msra.mxu0 %v52
    %421 = vmatprep.subr.mxu0 %v57
    %422 = vmatpush1.msra.mxu0 %v56
    %423 = vmatprep.subr.mxu0 %v61
    %424 = vmatpush1.msra.mxu0 %v60
    %425 = vmatprep.subr.mxu0 %v65
    %426 = vmatpush1.msra.mxu0 %v64
    %427 = vmatprep.subr.mxu0 %v69
    %428 = vmatpush1.msra.mxu0 %v68
    %429 = vmatprep.subr.mxu0 %v73
    %430 = vmatpush1.msra.mxu0 %v72
    %431 = vmatprep.subr.mxu0 %v77
    %432 = vmatpush1.msra.mxu0 %v76
    %433 = vmatprep.subr.mxu0 %v81
    %434 = vmatpush1.msra.mxu0 %v80
    %435 = vmatprep.subr.mxu0 %v85
    %436 = vmatpush1.msra.mxu0 %v84
    %437 = vmatprep.subr.mxu0 %v89
    %438 = vmatpush1.msra.mxu0 %v88
    %439 = vmatprep.subr.mxu0 %v93
    %440 = vmatpush1.msra.mxu0 %v92
    %441 = vmatprep.subr.mxu0 %v97
    %442 = vmatpush1.msra.mxu0 %v96
    %443 = vmatprep.subr.mxu0 %v101
    %444 = vmatpush1.msra.mxu0 %v100
    %445 = vmatprep.subr.mxu0 %v105
    %446 = vmatpush1.msra.mxu0 %v104
    %447 = vmatprep.subr.mxu0 %v109
    %448 = vmatpush1.msra.mxu0 %v108
    %449 = vmatprep.subr.mxu0 %v113
    %450 = vmatpush1.msra.mxu0 %v112
    %451 = vmatprep.subr.mxu0 %v117
    %452 = vmatpush1.msra.mxu0 %v116
    %453 = vmatprep.subr.mxu0 %v121
    %454 = vmatpush1.msra.mxu0 %v120
    %455 = vmatprep.subr.mxu0 %v125
    %456 = vmatpush1.msra.mxu0 %v124
    %457 = vmatprep.subr.mxu0 %v129
    %458 = vmatpush1.msra.mxu0 %v128
    %459 = vmatprep.subr.mxu0 %v133
    %460 = vmatpush1.msra.mxu0 %v132
    %461 = vmatprep.subr.mxu0 %v137
    %462 = vmatpush1.msra.mxu0 %v136
    %463 = vmatprep.subr.mxu0 %v141
    %464 = vmatpush1.msra.mxu0 %v140
    %465 = vmatprep.subr.mxu0 %v145
    %466 = vmatpush1.msra.mxu0 %v144
    %467 = vmatprep.subr.mxu0 %v149
    %468 = vmatpush1.msra.mxu0 %v148
    %469 = vmatprep.subr.mxu0 %v153
    %470 = vmatpush1.msra.mxu0 %v152
    %471 = vmatprep.subr.mxu0 %v157
    %472 = vmatpush1.msra.mxu0 %v156
    %473 = vmatprep.subr.mxu0 %v161
    %474 = vmatpush1.msra.mxu0 %v160
    %475 = vmatprep.mubr.f32.mxu0 %v339
    %476 = vmatmul.mubr.f32.gmra.mrb[0].mxu0 %v33
    %v477 = vpop.f32.mrb[0].mxu0
    %v478 = vadd.f32 %v174, %v477
    %v479 = vpop.f32.mrb[0].mxu0
    %v480 = vadd.f32 %v178, %v479
    %481 = vdwg.mxu0
    %v482 = vtanh.pop %v407
    %v483 = vtanh.pop %v409
    %v484 = vtanh.pop %v478
    %v485 = vtanh.pop %v480
    %v486 = vadd.f32 %v482, 1.0
    %v487 = vmul.f32 %v486, 0.5
    %v488 = vadd.f32 %v483, 1.0
    %v489 = vmul.f32 %v488, 0.5
    %v490 = vadd.f32 %v485, 1.0
    %v491 = vmul.f32 %v490, 0.5
    %v492 = vmul.f32 %v489, %v337
    %v493 = vmul.f32 %v487, %v484
    %v494 = vadd.f32 %v492, %v493
    %v495 = vtanh.pop %v494
    %v496 = vmul.f32 %v491, %v495
    %497 = vmatprep.subr.mxu0 %v35
    %498 = vmatpush1.msra.mxu0 %v34
    %499 = vmatprep.subr.mxu0 %v39
    %500 = vmatpush1.msra.mxu0 %v38
    %501 = vmatprep.subr.mxu0 %v43
    %502 = vmatpush1.msra.mxu0 %v42
    %503 = vmatprep.subr.mxu0 %v47
    %504 = vmatpush1.msra.mxu0 %v46
    %505 = vmatprep.subr.mxu0 %v51
    %506 = vmatpush1.msra.mxu0 %v50
    %507 = vmatprep.subr.mxu0 %v55
    %508 = vmatpush1.msra.mxu0 %v54
    %509 = vmatprep.subr.mxu0 %v59
    %510 = vmatpush1.msra.mxu0 %v58
    %511 = vmatprep.subr.mxu0 %v63
    %512 = vmatpush1.msra.mxu0 %v62
    %513 = vmatprep.subr.mxu0 %v67
    %514 = vmatpush1.msra.mxu0 %v66
    %515 = vmatprep.subr.mxu0 %v71
    %516 = vmatpush1.msra.mxu0 %v70
    %517 = vmatprep.subr.mxu0 %v75
    %518 = vmatpush1.msra.mxu0 %v74
    %519 = vmatprep.subr.mxu0 %v79
    %520 = vmatpush1.msra.mxu0 %v78
    %521 = vmatprep.subr.mxu0 %v83
    %522 = vmatpush1.msra.mxu0 %v82
    %523 = vmatprep.subr.mxu0 %v87
    %524 = vmatpush1.msra.mxu0 %v86
    %525 = vmatprep.subr.mxu0 %v91
    %526 = vmatpush1.msra.mxu0 %v90
    %527 = vmatprep.subr.mxu0 %v95
    %528 = vmatpush1.msra.mxu0 %v94
    %529 = vmatprep.subr.mxu0 %v99
    %530 = vmatpush1.msra.mxu0 %v98
    %531 = vmatprep.subr.mxu0 %v103
    %532 = vmatpush1.msra.mxu0 %v102
    %533 = vmatprep.subr.mxu0 %v107
    %534 = vmatpush1.msra.mxu0 %v106
    %535 = vmatprep.subr.mxu0 %v111
    %536 = vmatpush1.msra.mxu0 %v110
    %537 = vmatprep.subr.mxu0 %v115
    %538 = vmatpush1.msra.mxu0 %v114
    %539 = vmatprep.subr.mxu0 %v119
    %540 = vmatpush1.msra.mxu0 %v118
    %541 = vmatprep.subr.mxu0 %v123
    %542 = vmatpush1.msra.mxu0 %v122
    %543 = vmatprep.subr.mxu0 %v127
    %544 = vmatpush1.msra.mxu0 %v126
    %545 = vmatprep.subr.mxu0 %v131
    %546 = vmatpush1.msra.mxu0 %v130
    %547 = vmatprep.subr.mxu0 %v135
    %548 = vmatpush1.msra.mxu0 %v134
    %549 = vmatprep.subr.mxu0 %v139
    %550 = vmatpush1.msra.mxu0 %v138
    %551 = vmatprep.subr.mxu0 %v143
    %552 = vmatpush1.msra.mxu0 %v142
    %553 = vmatprep.subr.mxu0 %v147
    %554 = vmatpush1.msra.mxu0 %v146
    %555 = vmatprep.subr.mxu0 %v151
    %556 = vmatpush1.msra.mxu0 %v150
    %557 = vmatprep.subr.mxu0 %v155
    %558 = vmatpush1.msra.mxu0 %v154
    %559 = vmatprep.subr.mxu0 %v159
    %560 = vmatpush1.msra.mxu0 %v158
    %561 = vmatprep.mubr.f32.mxu0 %v496
    %562 = vmatmul.mubr.f32.gmra.mrb[0].mxu0 %v33
    %v563 = vpop.f32.mrb[0].mxu0
    %v564 = vadd.f32 %v166, %v563
    %v565 = vpop.f32.mrb[0].mxu0
    %v566 = vadd.f32 %v170, %v565
    %567 = vdwg.mxu0
    %568 = vmatprep.subr.mxu0 %v37
    %569 = vmatpush1.msra.mxu0 %v36
    %570 = vmatprep.subr.mxu0 %v41
    %571 = vmatpush1.msra.mxu0 %v40
    %572 = vmatprep.subr.mxu0 %v45
    %573 = vmatpush1.msra.mxu0 %v44
    %574 = vmatprep.subr.mxu0 %v49
    %575 = vmatpush1.msra.mxu0 %v48
    %576 = vmatprep.subr.mxu0 %v53
    %577 = vmatpush1.msra.mxu0 %v52
    %578 = vmatprep.subr.mxu0 %v57
    %579 = vmatpush1.msra.mxu0 %v56
    %580 = vmatprep.subr.mxu0 %v61
    %581 = vmatpush1.msra.mxu0 %v60
    %582 = vmatprep.subr.mxu0 %v65
    %583 = vmatpush1.msra.mxu0 %v64
    %584 = vmatprep.subr.mxu0 %v69
    %585 = vmatpush1.msra.mxu0 %v68
    %586 = vmatprep.subr.mxu0 %v73
    %587 = vmatpush1.msra.mxu0 %v72
    %588 = vmatprep.subr.mxu0 %v77
    %589 = vmatpush1.msra.mxu0 %v76
    %590 = vmatprep.subr.mxu0 %v81
    %591 = vmatpush1.msra.mxu0 %v80
    %592 = vmatprep.subr.mxu0 %v85
    %593 = vmatpush1.msra.mxu0 %v84
    %594 = vmatprep.subr.mxu0 %v89
    %595 = vmatpush1.msra.mxu0 %v88
    %596 = vmatprep.subr.mxu0 %v93
    %597 = vmatpush1.msra.mxu0 %v92
    %598 = vmatprep.subr.mxu0 %v97
    %599 = vmatpush1.msra.mxu0 %v96
    %600 = vmatprep.subr.mxu0 %v101
    %601 = vmatpush1.msra.mxu0 %v100
    %602 = vmatprep.subr.mxu0 %v105
    %603 = vmatpush1.msra.mxu0 %v104
    %604 = vmatprep.subr.mxu0 %v109
    %605 = vmatpush1.msra.mxu0 %v108
    %606 = vmatprep.subr.mxu0 %v113
    %607 = vmatpush1.msra.mxu0 %v112
    %608 = vmatprep.subr.mxu0 %v117
    %609 = vmatpush1.msra.mxu0 %v116
    %610 = vmatprep.subr.mxu0 %v121
    %611 = vmatpush1.msra.mxu0 %v120
    %612 = vmatprep.subr.mxu0 %v125
    %613 = vmatpush1.msra.mxu0 %v124
    %614 = vmatprep.subr.mxu0 %v129
    %615 = vmatpush1.msra.mxu0 %v128
    %616 = vmatprep.subr.mxu0 %v133
    %617 = vmatpush1.msra.mxu0 %v132
    %618 = vmatprep.subr.mxu0 %v137
    %619 = vmatpush1.msra.mxu0 %v136
    %620 = vmatprep.subr.mxu0 %v141
    %621 = vmatpush1.msra.mxu0 %v140
    %622 = vmatprep.subr.mxu0 %v145
    %623 = vmatpush1.msra.mxu0 %v144
    %624 = vmatprep.subr.mxu0 %v149
    %625 = vmatpush1.msra.mxu0 %v148
    %626 = vmatprep.subr.mxu0 %v153
    %627 = vmatpush1.msra.mxu0 %v152
    %628 = vmatprep.subr.mxu0 %v157
    %629 = vmatpush1.msra.mxu0 %v156
    %630 = vmatprep.subr.mxu0 %v161
    %631 = vmatpush1.msra.mxu0 %v160
    %632 = vmatprep.mubr.f32.mxu0 %v496
    %633 = vmatmul.mubr.f32.gmra.mrb[0].mxu0 %v33
    %v634 = vpop.f32.mrb[0].mxu0
    %v635 = vadd.f32 %v174, %v634
    %v636 = vpop.f32.mrb[0].mxu0
    %v637 = vadd.f32 %v178, %v636
    %638 = vdwg.mxu0
    %v639 = vtanh.pop %v564
    %v640 = vtanh.pop %v566
    %v641 = vtanh.pop %v635
    %v642 = vtanh.pop %v637
    %v643 = vadd.f32 %v639, 1.0
    %v644 = vmul.f32 %v643, 0.5
    %v645 = vadd.f32 %v640, 1.0
    %v646 = vmul.f32 %v645, 0.5
    %v647 = vadd.f32 %v642, 1.0
    %v648 = vmul.f32 %v647, 0.5
    %v649 = vmul.f32 %v646, %v494
    %v650 = vmul.f32 %v644, %v641
    %v651 = vadd.f32 %v649, %v650
    %v652 = vtanh.pop %v651
    %v653 = vmul.f32 %v648, %v652
    %654 = vmatprep.subr.mxu0 %v35
    %655 = vmatpush1.msra.mxu0 %v34
    %656 = vmatprep.subr.mxu0 %v39
    %657 = vmatpush1.msra.mxu0 %v38
    %658 = vmatprep.subr.mxu0 %v43
    %659 = vmatpush1.msra.mxu0 %v42
    %660 = vmatprep.subr.mxu0 %v47
    %661 = vmatpush1.msra.mxu0 %v46
    %662 = vmatprep.subr.mxu0 %v51
    %663 = vmatpush1.msra.mxu0 %v50
    %664 = vmatprep.subr.mxu0 %v55
    %665 = vmatpush1.msra.mxu0 %v54
    %666 = vmatprep.subr.mxu0 %v59
    %667 = vmatpush1.msra.mxu0 %v58
    %668 = vmatprep.subr.mxu0 %v63
    %669 = vmatpush1.msra.mxu0 %v62
    %670 = vmatprep.subr.mxu0 %v67
    %671 = vmatpush1.msra.mxu0 %v66
    %672 = vmatprep.subr.mxu0 %v71
    %673 = vmatpush1.msra.mxu0 %v70
    %674 = vmatprep.subr.mxu0 %v75
    %675 = vmatpush1.msra.mxu0 %v74
    %676 = vmatprep.subr.mxu0 %v79
    %677 = vmatpush1.msra.mxu0 %v78
    %678 = vmatprep.subr.mxu0 %v83
    %679 = vmatpush1.msra.mxu0 %v82
    %680 = vmatprep.subr.mxu0 %v87
    %681 = vmatpush1.msra.mxu0 %v86
    %682 = vmatprep.subr.mxu0 %v91
    %683 = vmatpush1.msra.mxu0 %v90
    %684 = vmatprep.subr.mxu0 %v95
    %685 = vmatpush1.msra.mxu0 %v94
    %686 = vmatprep.subr.mxu0 %v99
    %687 = vmatpush1.msra.mxu0 %v98
    %688 = vmatprep.subr.mxu0 %v103
    %689 = vmatpush1.msra.mxu0 %v102
    %690 = vmatprep.subr.mxu0 %v107
    %691 = vmatpush1.msra.mxu0 %v106
    %692 = vmatprep.subr.mxu0 %v111
    %693 = vmatpush1.msra.mxu0 %v110
    %694 = vmatprep.subr.mxu0 %v115
    %695 = vmatpush1.msra.mxu0 %v114
    %696 = vmatprep.subr.mxu0 %v119
    %697 = vmatpush1.msra.mxu0 %v118
    %698 = vmatprep.subr.mxu0 %v123
    %699 = vmatpush1.msra.mxu0 %v122
    %700 = vmatprep.subr.mxu0 %v127
    %701 = vmatpush1.msra.mxu0 %v126
    %702 = vmatprep.subr.mxu0 %v131
    %703 = vmatpush1.msra.mxu0 %v130
    %704 = vmatprep.subr.mxu0 %v135
    %705 = vmatpush1.msra.mxu0 %v134
    %706 = vmatprep.subr.mxu0 %v139
    %707 = vmatpush1.msra.mxu0 %v138
    %708 = vmatprep.subr.mxu0 %v143
    %709 = vmatpush1.msra.mxu0 %v142
    %710 = vmatprep.subr.mxu0 %v147
    %711 = vmatpush1.msra.mxu0 %v146
    %712 = vmatprep.subr.mxu0 %v151
    %713 = vmatpush1.msra.mxu0 %v150
    %714 = vmatprep.subr.mxu0 %v155
    %715 = vmatpush1.msra.mxu0 %v154
    %716 = vmatprep.subr.mxu0 %v159
    %717 = vmatpush1.msra.mxu0 %v158
    %718 = vmatprep.mubr.f32.mxu0 %v653
    %719 = vmatmul.mubr.f32.gmra.mrb[0].mxu0 %v33
    %v720 = vpop.f32.mrb[0].mxu0
    %v721 = vadd.f32 %v166, %v720
    %v722 = vpop.f32.mrb[0].mxu0
    %v723 = vadd.f32 %v170, %v722
    %724 = vdwg.mxu0
    %725 = vmatprep.subr.mxu0 %v37
    %726 = vmatpush1.msra.mxu0 %v36
    %727 = vmatprep.subr.mxu0 %v41
    %728 = vmatpush1.msra.mxu0 %v40
    %729 = vmatprep.subr.mxu0 %v45
    %730 = vmatpush1.msra.mxu0 %v44
    %731 = vmatprep.subr.mxu0 %v49
    %732 = vmatpush1.msra.mxu0 %v48
    %733 = vmatprep.subr.mxu0 %v53
    %734 = vmatpush1.msra.mxu0 %v52
    %735 = vmatprep.subr.mxu0 %v57
    %736 = vmatpush1.msra.mxu0 %v56
    %737 = vmatprep.subr.mxu0 %v61
    %738 = vmatpush1.msra.mxu0 %v60
    %739 = vmatprep.subr.mxu0 %v65
    %740 = vmatpush1.msra.mxu0 %v64
    %741 = vmatprep.subr.mxu0 %v69
    %742 = vmatpush1.msra.mxu0 %v68
    %743 = vmatprep.subr.mxu0 %v73
    %744 = vmatpush1.msra.mxu0 %v72
    %745 = vmatprep.subr.mxu0 %v77
    %746 = vmatpush1.msra.mxu0 %v76
    %747 = vmatprep.subr.mxu0 %v81
    %748 = vmatpush1.msra.mxu0 %v80
    %749 = vmatprep.subr.mxu0 %v85
    %750 = vmatpush1.msra.mxu0 %v84
    %751 = vmatprep.subr.mxu0 %v89
    %752 = vmatpush1.msra.mxu0 %v88
    %753 = vmatprep.subr.mxu0 %v93
    %754 = vmatpush1.msra.mxu0 %v92
    %755 = vmatprep.subr.mxu0 %v97
    %756 = vmatpush1.msra.mxu0 %v96
    %757 = vmatprep.subr.mxu0 %v101
    %758 = vmatpush1.msra.mxu0 %v100
    %759 = vmatprep.subr.mxu0 %v105
    %760 = vmatpush1.msra.mxu0 %v104
    %761 = vmatprep.subr.mxu0 %v109
    %762 = vmatpush1.msra.mxu0 %v108
    %763 = vmatprep.subr.mxu0 %v113
    %764 = vmatpush1.msra.mxu0 %v112
    %765 = vmatprep.subr.mxu0 %v117
    %766 = vmatpush1.msra.mxu0 %v116
    %767 = vmatprep.subr.mxu0 %v121
    %768 = vmatpush1.msra.mxu0 %v120
    %769 = vmatprep.subr.mxu0 %v125
    %770 = vmatpush1.msra.mxu0 %v124
    %771 = vmatprep.subr.mxu0 %v129
    %772 = vmatpush1.msra.mxu0 %v128
    %773 = vmatprep.subr.mxu0 %v133
    %774 = vmatpush1.msra.mxu0 %v132
    %775 = vmatprep.subr.mxu0 %v137
    %776 = vmatpush1.msra.mxu0 %v136
    %777 = vmatprep.subr.mxu0 %v141
    %778 = vmatpush1.msra.mxu0 %v140
    %779 = vmatprep.subr.mxu0 %v145
    %780 = vmatpush1.msra.mxu0 %v144
    %781 = vmatprep.subr.mxu0 %v149
    %782 = vmatpush1.msra.mxu0 %v148
    %783 = vmatprep.subr.mxu0 %v153
    %784 = vmatpush1.msra.mxu0 %v152
    %785 = vmatprep.subr.mxu0 %v157
    %786 = vmatpush1.msra.mxu0 %v156
    %787 = vmatprep.subr.mxu0 %v161
    %788 = vmatpush1.msra.mxu0 %v160
    %789 = vmatprep.mubr.f32.mxu0 %v653
    %790 = vmatmul.mubr.f32.gmra.mrb[0].mxu0 %v33
    %v791 = vpop.f32.mrb[0].mxu0
    %v792 = vadd.f32 %v174, %v791
    %v793 = vpop.f32.mrb[0].mxu0
    %v794 = vadd.f32 %v178, %v793
    %795 = vdwg.mxu0
    %v796 = vtanh.pop %v721
    %v797 = vtanh.pop %v723
    %v798 = vtanh.pop %v792
    %v799 = vtanh.pop %v794
    %v800 = vadd.f32 %v796, 1.0
    %v801 = vmul.f32 %v800, 0.5
    %v802 = vadd.f32 %v797, 1.0
    %v803 = vmul.f32 %v802, 0.5
    %v804 = vadd.f32 %v799, 1.0
    %v805 = vmul.f32 %v804, 0.5
    %v806 = vmul.f32 %v803, %v651
    %v807 = vmul.f32 %v801, %v798
    %v808 = vadd.f32 %v806, %v807
    %v809 = vtanh.pop %v808
    %v810 = vmul.f32 %v805, %v809
    %811 = vmatprep.subr.mxu0 %v35
    %812 = vmatpush1.msra.mxu0 %v34
    %813 = vmatprep.subr.mxu0 %v39
    %814 = vmatpush1.msra.mxu0 %v38
    %815 = vmatprep.subr.mxu0 %v43
    %816 = vmatpush1.msra.mxu0 %v42
    %817 = vmatprep.subr.mxu0 %v47
    %818 = vmatpush1.msra.mxu0 %v46
    %819 = vmatprep.subr.mxu0 %v51
    %820 = vmatpush1.msra.mxu0 %v50
    %821 = vmatprep.subr.mxu0 %v55
    %822 = vmatpush1.msra.mxu0 %v54
    %823 = vmatprep.subr.mxu0 %v59
    %824 = vmatpush1.msra.mxu0 %v58
    %825 = vmatprep.subr.mxu0 %v63
    %826 = vmatpush1.msra.mxu0 %v62
    %827 = vmatprep.subr.mxu0 %v67
    %828 = vmatpush1.msra.mxu0 %v66
    %829 = vmatprep.subr.mxu0 %v71
    %830 = vmatpush1.msra.mxu0 %v70
    %831 = vmatprep.subr.mxu0 %v75
    %832 = vmatpush1.msra.mxu0 %v74
    %833 = vmatprep.subr.mxu0 %v79
    %834 = vmatpush1.msra.mxu0 %v78
    %835 = vmatprep.subr.mxu0 %v83
    %836 = vmatpush1.msra.mxu0 %v82
    %837 = vmatprep.subr.mxu0 %v87
    %838 = vmatpush1.msra.mxu0 %v86
    %839 = vmatprep.subr.mxu0 %v91
    %840 = vmatpush1.msra.mxu0 %v90
    %841 = vmatprep.subr.mxu0 %v95
    %842 = vmatpush1.msra.mxu0 %v94
    %843 = vmatprep.subr.mxu0 %v99
    %844 = vmatpush1.msra.mxu0 %v98
    %845 = vmatprep.subr.mxu0 %v103
    %846 = vmatpush1.msra.mxu0 %v102
    %847 = vmatprep.subr.mxu0 %v107
    %848 = vmatpush1.msra.mxu0 %v106
    %849 = vmatprep.subr.mxu0 %v111
    %850 = vmatpush1.msra.mxu0 %v110
    %851 = vmatprep.subr.mxu0 %v115
    %852 = vmatpush1.msra.mxu0 %v114
    %853 = vmatprep.subr.mxu0 %v119
    %854 = vmatpush1.msra.mxu0 %v118
    %855 = vmatprep.subr.mxu0 %v123
    %856 = vmatpush1.msra.mxu0 %v122
    %857 = vmatprep.subr.mxu0 %v127
    %858 = vmatpush1.msra.mxu0 %v126
    %859 = vmatprep.subr.mxu0 %v131
    %860 = vmatpush1.msra.mxu0 %v130
    %861 = vmatprep.subr.mxu0 %v135
    %862 = vmatpush1.msra.mxu0 %v134
    %863 = vmatprep.subr.mxu0 %v139
    %864 = vmatpush1.msra.mxu0 %v138
    %865 = vmatprep.subr.mxu0 %v143
    %866 = vmatpush1.msra.mxu0 %v142
    %867 = vmatprep.subr.mxu0 %v147
    %868 = vmatpush1.msra.mxu0 %v146
    %869 = vmatprep.subr.mxu0 %v151
    %870 = vmatpush1.msra.mxu0 %v150
    %871 = vmatprep.subr.mxu0 %v155
    %872 = vmatpush1.msra.mxu0 %v154
    %873 = vmatprep.subr.mxu0 %v159
    %874 = vmatpush1.msra.mxu0 %v158
    %875 = vmatprep.mubr.f32.mxu0 %v810
    %876 = vmatmul.mubr.f32.gmra.mrb[0].mxu0 %v33
    %v877 = vpop.f32.mrb[0].mxu0
    %v878 = vadd.f32 %v166, %v877
    %v879 = vpop.f32.mrb[0].mxu0
    %v880 = vadd.f32 %v170, %v879
    %881 = vdwg.mxu0
    %882 = vmatprep.subr.mxu0 %v37
    %883 = vmatpush1.msra.mxu0 %v36
    %884 = vmatprep.subr.mxu0 %v41
    %885 = vmatpush1.msra.mxu0 %v40
    %886 = vmatprep.subr.mxu0 %v45
    %887 = vmatpush1.msra.mxu0 %v44
    %888 = vmatprep.subr.mxu0 %v49
    %889 = vmatpush1.msra.mxu0 %v48
    %890 = vmatprep.subr.mxu0 %v53
    %891 = vmatpush1.msra.mxu0 %v52
    %892 = vmatprep.subr.mxu0 %v57
    %893 = vmatpush1.msra.mxu0 %v56
    %894 = vmatprep.subr.mxu0 %v61
    %895 = vmatpush1.msra.mxu0 %v60
    %896 = vmatprep.subr.mxu0 %v65
    %897 = vmatpush1.msra.mxu0 %v64
    %898 = vmatprep.subr.mxu0 %v69
    %899 = vmatpush1.msra.mxu0 %v68
    %900 = vmatprep.subr.mxu0 %v73
    %901 = vmatpush1.msra.mxu0 %v72
    %902 = vmatprep.subr.mxu0 %v77
    %903 = vmatpush1.msra.mxu0 %v76
    %904 = vmatprep.subr.mxu0 %v81
    %905 = vmatpush1.msra.mxu0 %v80
    %906 = vmatprep.subr.mxu0 %v85
    %907 = vmatpush1.msra.mxu0 %v84
    %908 = vmatprep.subr.mxu0 %v89
    %909 = vmatpush1.msra.mxu0 %v88
    %910 = vmatprep.subr.mxu0 %v93
    %911 = vmatpush1.msra.mxu0 %v92
    %912 = vmatprep.subr.mxu0 %v97
    %913 = vmatpush1.msra.mxu0 %v96
    %914 = vmatprep.subr.mxu0 %v101
    %915 = vmatpush1.msra.mxu0 %v100
    %916 = vmatprep.subr.mxu0 %v105
    %917 = vmatpush1.msra.mxu0 %v104
    %918 = vmatprep.subr.mxu0 %v109
    %919 = vmatpush1.msra.mxu0 %v108
    %920 = vmatprep.subr.mxu0 %v113
    %921 = vmatpush1.msra.mxu0 %v112
    %922 = vmatprep.subr.mxu0 %v117
    %923 = vmatpush1.msra.mxu0 %v116
    %924 = vmatprep.subr.mxu0 %v121
    %925 = vmatpush1.msra.mxu0 %v120
    %926 = vmatprep.subr.mxu0 %v125
    %927 = vmatpush1.msra.mxu0 %v124
    %928 = vmatprep.subr.mxu0 %v129
    %929 = vmatpush1.msra.mxu0 %v128
    %930 = vmatprep.subr.mxu0 %v133
    %931 = vmatpush1.msra.mxu0 %v132
    %932 = vmatprep.subr.mxu0 %v137
    %933 = vmatpush1.msra.mxu0 %v136
    %934 = vmatprep.subr.mxu0 %v141
    %935 = vmatpush1.msra.mxu0 %v140
    %936 = vmatprep.subr.mxu0 %v145
    %937 = vmatpush1.msra.mxu0 %v144
    %938 = vmatprep.subr.mxu0 %v149
    %939 = vmatpush1.msra.mxu0 %v148
    %940 = vmatprep.subr.mxu0 %v153
    %941 = vmatpush1.msra.mxu0 %v152
    %942 = vmatprep.subr.mxu0 %v157
    %943 = vmatpush1.msra.mxu0 %v156
    %944 = vmatprep.subr.mxu0 %v161
    %945 = vmatpush1.msra.mxu0 %v160
    %946 = vmatprep.mubr.f32.mxu0 %v810
    %947 = vmatmul.mubr.f32.gmra.mrb[0].mxu0 %v33
    %v948 = vpop.f32.mrb[0].mxu0
    %v949 = vadd.f32 %v174, %v948
    %v950 = vpop.f32.mrb[0].mxu0
    %v951 = vadd.f32 %v178, %v950
    %952 = vdwg.mxu0
    %v953 = vtanh.pop %v878
    %v954 = vtanh.pop %v880
    %v955 = vtanh.pop %v949
    %v956 = vtanh.pop %v951
    %v957 = vadd.f32 %v953, 1.0
    %v958 = vmul.f32 %v957, 0.5
    %v959 = vadd.f32 %v954, 1.0
    %v960 = vmul.f32 %v959, 0.5
    %v961 = vadd.f32 %v956, 1.0
    %v962 = vmul.f32 %v961, 0.5
    %v963 = vmul.f32 %v960, %v808
    %v964 = vmul.f32 %v958, %v955
    %v965 = vadd.f32 %v963, %v964
    %v966 = vtanh.pop %v965
    %v967 = vmul.f32 %v962, %v966
    %968 = vmatprep.subr.mxu0 %v35
    %969 = vmatpush1.msra.mxu0 %v34
    %970 = vmatprep.subr.mxu0 %v39
    %971 = vmatpush1.msra.mxu0 %v38
    %972 = vmatprep.subr.mxu0 %v43
    %973 = vmatpush1.msra.mxu0 %v42
    %974 = vmatprep.subr.mxu0 %v47
    %975 = vmatpush1.msra.mxu0 %v46
    %976 = vmatprep.subr.mxu0 %v51
    %977 = vmatpush1.msra.mxu0 %v50
    %978 = vmatprep.subr.mxu0 %v55
    %979 = vmatpush1.msra.mxu0 %v54
    %980 = vmatprep.subr.mxu0 %v59
    %981 = vmatpush1.msra.mxu0 %v58
    %982 = vmatprep.subr.mxu0 %v63
    %983 = vmatpush1.msra.mxu0 %v62
    %984 = vmatprep.subr.mxu0 %v67
    %985 = vmatpush1.msra.mxu0 %v66
    %986 = vmatprep.subr.mxu0 %v71
    %987 = vmatpush1.msra.mxu0 %v70
    %988 = vmatprep.subr.mxu0 %v75
    %989 = vmatpush1.msra.mxu0 %v74
    %990 = vmatprep.subr.mxu0 %v79
    %991 = vmatpush1.msra.mxu0 %v78
    %992 = vmatprep.subr.mxu0 %v83
    %993 = vmatpush1.msra.mxu0 %v82
    %994 = vmatprep.subr.mxu0 %v87
    %995 = vmatpush1.msra.mxu0 %v86
    %996 = vmatprep.subr.mxu0 %v91
    %997 = vmatpush1.msra.mxu0 %v90
    %998 = vmatprep.subr.mxu0 %v95
    %999 = vmatpush1.msra.mxu0 %v94
    %1000 = vmatprep.subr.mxu0 %v99
    %1001 = vmatpush1.msra.mxu0 %v98
    %1002 = vmatprep.subr.mxu0 %v103
    %1003 = vmatpush1.msra.mxu0 %v102
    %1004 = vmatprep.subr.mxu0 %v107
    %1005 = vmatpush1.msra.mxu0 %v106
    %1006 = vmatprep.subr.mxu0 %v111
    %1007 = vmatpush1.msra.mxu0 %v110
    %1008 = vmatprep.subr.mxu0 %v115
    %1009 = vmatpush1.msra.mxu0 %v114
    %1010 = vmatprep.subr.mxu0 %v119
    %1011 = vmatpush1.msra.mxu0 %v118
    %1012 = vmatprep.subr.mxu0 %v123
    %1013 = vmatpush1.msra.mxu0 %v122
    %1014 = vmatprep.subr.mxu0 %v127
    %1015 = vmatpush1.msra.mxu0 %v126
    %1016 = vmatprep.subr.mxu0 %v131
    %1017 = vmatpush1.msra.mxu0 %v130
    %1018 = vmatprep.subr.mxu0 %v135
    %1019 = vmatpush1.msra.mxu0 %v134
    %1020 = vmatprep.subr.mxu0 %v139
    %1021 = vmatpush1.msra.mxu0 %v138
    %1022 = vmatprep.subr.mxu0 %v143
    %1023 = vmatpush1.msra.mxu0 %v142
    %1024 = vmatprep.subr.mxu0 %v147
    %1025 = vmatpush1.msra.mxu0 %v146
    %1026 = vmatprep.subr.mxu0 %v151
    %1027 = vmatpush1.msra.mxu0 %v150
    %1028 = vmatprep.subr.mxu0 %v155
    %1029 = vmatpush1.msra.mxu0 %v154
    %1030 = vmatprep.subr.mxu0 %v159
    %1031 = vmatpush1.msra.mxu0 %v158
    %1032 = vmatprep.mubr.f32.mxu0 %v967
    %1033 = vmatmul.mubr.f32.gmra.mrb[0].mxu0 %v33
    %v1034 = vpop.f32.mrb[0].mxu0
    %v1035 = vadd.f32 %v166, %v1034
    %v1036 = vpop.f32.mrb[0].mxu0
    %v1037 = vadd.f32 %v170, %v1036
    %1038 = vdwg.mxu0
    %1039 = vmatprep.subr.mxu0 %v37
    %1040 = vmatpush1.msra.mxu0 %v36
    %1041 = vmatprep.subr.mxu0 %v41
    %1042 = vmatpush1.msra.mxu0 %v40
    %1043 = vmatprep.subr.mxu0 %v45
    %1044 = vmatpush1.msra.mxu0 %v44
    %1045 = vmatprep.subr.mxu0 %v49
    %1046 = vmatpush1.msra.mxu0 %v48
    %1047 = vmatprep.subr.mxu0 %v53
    %1048 = vmatpush1.msra.mxu0 %v52
    %1049 = vmatprep.subr.mxu0 %v57
    %1050 = vmatpush1.msra.mxu0 %v56
    %1051 = vmatprep.subr.mxu0 %v61
    %1052 = vmatpush1.msra.mxu0 %v60
    %1053 = vmatprep.subr.mxu0 %v65
    %1054 = vmatpush1.msra.mxu0 %v64
    %1055 = vmatprep.subr.mxu0 %v69
    %1056 = vmatpush1.msra.mxu0 %v68
    %1057 = vmatprep.subr.mxu0 %v73
    %1058 = vmatpush1.msra.mxu0 %v72
    %1059 = vmatprep.subr.mxu0 %v77
    %1060 = vmatpush1.msra.mxu0 %v76
    %1061 = vmatprep.subr.mxu0 %v81
    %1062 = vmatpush1.msra.mxu0 %v80
    %1063 = vmatprep.subr.mxu0 %v85
    %1064 = vmatpush1.msra.mxu0 %v84
    %1065 = vmatprep.subr.mxu0 %v89
    %1066 = vmatpush1.msra.mxu0 %v88
    %1067 = vmatprep.subr.mxu0 %v93
    %1068 = vmatpush1.msra.mxu0 %v92
    %1069 = vmatprep.subr.mxu0 %v97
    %1070 = vmatpush1.msra.mxu0 %v96
    %1071 = vmatprep.subr.mxu0 %v101
    %1072 = vmatpush1.msra.mxu0 %v100
    %1073 = vmatprep.subr.mxu0 %v105
    %1074 = vmatpush1.msra.mxu0 %v104
    %1075 = vmatprep.subr.mxu0 %v109
    %1076 = vmatpush1.msra.mxu0 %v108
    %1077 = vmatprep.subr.mxu0 %v113
    %1078 = vmatpush1.msra.mxu0 %v112
    %1079 = vmatprep.subr.mxu0 %v117
    %1080 = vmatpush1.msra.mxu0 %v116
    %1081 = vmatprep.subr.mxu0 %v121
    %1082 = vmatpush1.msra.mxu0 %v120
    %1083 = vmatprep.subr.mxu0 %v125
    %1084 = vmatpush1.msra.mxu0 %v124
    %1085 = vmatprep.subr.mxu0 %v129
    %1086 = vmatpush1.msra.mxu0 %v128
    %1087 = vmatprep.subr.mxu0 %v133
    %1088 = vmatpush1.msra.mxu0 %v132
    %1089 = vmatprep.subr.mxu0 %v137
    %1090 = vmatpush1.msra.mxu0 %v136
    %1091 = vmatprep.subr.mxu0 %v141
    %1092 = vmatpush1.msra.mxu0 %v140
    %1093 = vmatprep.subr.mxu0 %v145
    %1094 = vmatpush1.msra.mxu0 %v144
    %1095 = vmatprep.subr.mxu0 %v149
    %1096 = vmatpush1.msra.mxu0 %v148
    %1097 = vmatprep.subr.mxu0 %v153
    %1098 = vmatpush1.msra.mxu0 %v152
    %1099 = vmatprep.subr.mxu0 %v157
    %1100 = vmatpush1.msra.mxu0 %v156
    %1101 = vmatprep.subr.mxu0 %v161
    %1102 = vmatpush1.msra.mxu0 %v160
    %1103 = vmatprep.mubr.f32.mxu0 %v967
    %1104 = vmatmul.mubr.f32.gmra.mrb[0].mxu0 %v33
    %v1105 = vpop.f32.mrb[0].mxu0
    %v1106 = vadd.f32 %v174, %v1105
    %v1107 = vpop.f32.mrb[0].mxu0
    %v1108 = vadd.f32 %v178, %v1107
    %1109 = vdwg.mxu0
    %v1110 = vtanh.pop %v1035
    %v1111 = vtanh.pop %v1037
    %v1112 = vtanh.pop %v1106
    %v1113 = vtanh.pop %v1108
    %v1114 = vadd.f32 %v1110, 1.0
    %v1115 = vmul.f32 %v1114, 0.5
    %v1116 = vadd.f32 %v1111, 1.0
    %v1117 = vmul.f32 %v1116, 0.5
    %v1118 = vadd.f32 %v1113, 1.0
    %v1119 = vmul.f32 %v1118, 0.5
    %v1120 = vmul.f32 %v1117, %v965
    %v1121 = vmul.f32 %v1115, %v1112
    %v1122 = vadd.f32 %v1120, %v1121
    %v1123 = vtanh.pop %v1122
    %v1124 = vmul.f32 %v1119, %v1123
    %1125 = vmatprep.subr.mxu0 %v35
    %1126 = vmatpush1.msra.mxu0 %v34
    %1127 = vmatprep.subr.mxu0 %v39
    %1128 = vmatpush1.msra.mxu0 %v38
    %1129 = vmatprep.subr.mxu0 %v43
    %1130 = vmatpush1.msra.mxu0 %v42
    %1131 = vmatprep.subr.mxu0 %v47
    %1132 = vmatpush1.msra.mxu0 %v46
    %1133 = vmatprep.subr.mxu0 %v51
    %1134 = vmatpush1.msra.mxu0 %v50
    %1135 = vmatprep.subr.mxu0 %v55
    %1136 = vmatpush1.msra.mxu0 %v54
    %1137 = vmatprep.subr.mxu0 %v59
    %1138 = vmatpush1.msra.mxu0 %v58
    %1139 = vmatprep.subr.mxu0 %v63
    %1140 = vmatpush1.msra.mxu0 %v62
    %1141 = vmatprep.subr.mxu0 %v67
    %1142 = vmatpush1.msra.mxu0 %v66
    %1143 = vmatprep.subr.mxu0 %v71
    %1144 = vmatpush1.msra.mxu0 %v70
    %1145 = vmatprep.subr.mxu0 %v75
    %1146 = vmatpush1.msra.mxu0 %v74
    %1147 = vmatprep.subr.mxu0 %v79
    %1148 = vmatpush1.msra.mxu0 %v78
    %1149 = vmatprep.subr.mxu0 %v83
    %1150 = vmatpush1.msra.mxu0 %v82
    %1151 = vmatprep.subr.mxu0 %v87
    %1152 = vmatpush1.msra.mxu0 %v86
    %1153 = vmatprep.subr.mxu0 %v91
    %1154 = vmatpush1.msra.mxu0 %v90
    %1155 = vmatprep.subr.mxu0 %v95
    %1156 = vmatpush1.msra.mxu0 %v94
    %1157 = vmatprep.subr.mxu0 %v99
    %1158 = vmatpush1.msra.mxu0 %v98
    %1159 = vmatprep.subr.mxu0 %v103
    %1160 = vmatpush1.msra.mxu0 %v102
    %1161 = vmatprep.subr.mxu0 %v107
    %1162 = vmatpush1.msra.mxu0 %v106
    %1163 = vmatprep.subr.mxu0 %v111
    %1164 = vmatpush1.msra.mxu0 %v110
    %1165 = vmatprep.subr.mxu0 %v115
    %1166 = vmatpush1.msra.mxu0 %v114
    %1167 = vmatprep.subr.mxu0 %v119
    %1168 = vmatpush1.msra.mxu0 %v118
    %1169 = vmatprep.subr.mxu0 %v123
    %1170 = vmatpush1.msra.mxu0 %v122
    %1171 = vmatprep.subr.mxu0 %v127
    %1172 = vmatpush1.msra.mxu0 %v126
    %1173 = vmatprep.subr.mxu0 %v131
    %1174 = vmatpush1.msra.mxu0 %v130
    %1175 = vmatprep.subr.mxu0 %v135
    %1176 = vmatpush1.msra.mxu0 %v134
    %1177 = vmatprep.subr.mxu0 %v139
    %1178 = vmatpush1.msra.mxu0 %v138
    %1179 = vmatprep.subr.mxu0 %v143
    %1180 = vmatpush1.msra.mxu0 %v142
    %1181 = vmatprep.subr.mxu0 %v147
    %1182 = vmatpush1.msra.mxu0 %v146
    %1183 = vmatprep.subr.mxu0 %v151
    %1184 = vmatpush1.msra.mxu0 %v150
    %1185 = vmatprep.subr.mxu0 %v155
    %1186 = vmatpush1.msra.mxu0 %v154
    %1187 = vmatprep.subr.mxu0 %v159
    %1188 = vmatpush1.msra.mxu0 %v158
    %1189 = vmatprep.mubr.f32.mxu0 %v1124
    %1190 = vmatmul.mubr.f32.gmra.mrb[0].mxu0 %v33
    %v1191 = vpop.f32.mrb[0].mxu0
    %v1192 = vadd.f32 %v166, %v1191
    %v1193 = vpop.f32.mrb[0].mxu0
    %v1194 = vadd.f32 %v170, %v1193
    %1195 = vdwg.mxu0
    %1196 = vmatprep.subr.mxu0 %v37
    %1197 = vmatpush1.msra.mxu0 %v36
    %1198 = vmatprep.subr.mxu0 %v41
    %1199 = vmatpush1.msra.mxu0 %v40
    %1200 = vmatprep.subr.mxu0 %v45
    %1201 = vmatpush1.msra.mxu0 %v44
    %1202 = vmatprep.subr.mxu0 %v49
    %1203 = vmatpush1.msra.mxu0 %v48
    %1204 = vmatprep.subr.mxu0 %v53
    %1205 = vmatpush1.msra.mxu0 %v52
    %1206 = vmatprep.subr.mxu0 %v57
    %1207 = vmatpush1.msra.mxu0 %v56
    %1208 = vmatprep.subr.mxu0 %v61
    %1209 = vmatpush1.msra.mxu0 %v60
    %1210 = vmatprep.subr.mxu0 %v65
    %1211 = vmatpush1.msra.mxu0 %v64
    %1212 = vmatprep.subr.mxu0 %v69
    %1213 = vmatpush1.msra.mxu0 %v68
    %1214 = vmatprep.subr.mxu0 %v73
    %1215 = vmatpush1.msra.mxu0 %v72
    %1216 = vmatprep.subr.mxu0 %v77
    %1217 = vmatpush1.msra.mxu0 %v76
    %1218 = vmatprep.subr.mxu0 %v81
    %1219 = vmatpush1.msra.mxu0 %v80
    %1220 = vmatprep.subr.mxu0 %v85
    %1221 = vmatpush1.msra.mxu0 %v84
    %1222 = vmatprep.subr.mxu0 %v89
    %1223 = vmatpush1.msra.mxu0 %v88
    %1224 = vmatprep.subr.mxu0 %v93
    %1225 = vmatpush1.msra.mxu0 %v92
    %1226 = vmatprep.subr.mxu0 %v97
    %1227 = vmatpush1.msra.mxu0 %v96
    %1228 = vmatprep.subr.mxu0 %v101
    %1229 = vmatpush1.msra.mxu0 %v100
    %1230 = vmatprep.subr.mxu0 %v105
    %1231 = vmatpush1.msra.mxu0 %v104
    %1232 = vmatprep.subr.mxu0 %v109
    %1233 = vmatpush1.msra.mxu0 %v108
    %1234 = vmatprep.subr.mxu0 %v113
    %1235 = vmatpush1.msra.mxu0 %v112
    %1236 = vmatprep.subr.mxu0 %v117
    %1237 = vmatpush1.msra.mxu0 %v116
    %1238 = vmatprep.subr.mxu0 %v121
    %1239 = vmatpush1.msra.mxu0 %v120
    %1240 = vmatprep.subr.mxu0 %v125
    %1241 = vmatpush1.msra.mxu0 %v124
    %1242 = vmatprep.subr.mxu0 %v129
    %1243 = vmatpush1.msra.mxu0 %v128
    %1244 = vmatprep.subr.mxu0 %v133
    %1245 = vmatpush1.msra.mxu0 %v132
    %1246 = vmatprep.subr.mxu0 %v137
    %1247 = vmatpush1.msra.mxu0 %v136
    %1248 = vmatprep.subr.mxu0 %v141
    %1249 = vmatpush1.msra.mxu0 %v140
    %1250 = vmatprep.subr.mxu0 %v145
    %1251 = vmatpush1.msra.mxu0 %v144
    %1252 = vmatprep.subr.mxu0 %v149
    %1253 = vmatpush1.msra.mxu0 %v148
    %1254 = vmatprep.subr.mxu0 %v153
    %1255 = vmatpush1.msra.mxu0 %v152
    %1256 = vmatprep.subr.mxu0 %v157
    %1257 = vmatpush1.msra.mxu0 %v156
    %1258 = vmatprep.subr.mxu0 %v161
    %1259 = vmatpush1.msra.mxu0 %v160
    %1260 = vmatprep.mubr.f32.mxu0 %v1124
    %1261 = vmatmul.mubr.f32.gmra.mrb[0].mxu0 %v33
    %v1262 = vpop.f32.mrb[0].mxu0
    %v1263 = vadd.f32 %v174, %v1262
    %v1264 = vpop.f32.mrb[0].mxu0
    %v1265 = vadd.f32 %v178, %v1264
    %1266 = vdwg.mxu0
    %v1267 = vtanh.pop %v1192
    %v1268 = vtanh.pop %v1194
    %v1269 = vtanh.pop %v1263
    %v1270 = vtanh.pop %v1265
    %v1271 = vadd.f32 %v1267, 1.0
    %v1272 = vmul.f32 %v1271, 0.5
    %v1273 = vadd.f32 %v1268, 1.0
    %v1274 = vmul.f32 %v1273, 0.5
    %v1275 = vadd.f32 %v1270, 1.0
    %v1276 = vmul.f32 %v1275, 0.5
    %v1277 = vmul.f32 %v1274, %v1122
    %v1278 = vmul.f32 %v1272, %v1269
    %v1279 = vadd.f32 %v1277, %v1278
    %v1280 = vtanh.pop %v1279
    %v1281 = vmul.f32 %v1276, %v1280
    %1282 = vmatprep.subr.mxu0 %v35
    %1283 = vmatpush1.msra.mxu0 %v34
    %1284 = vmatprep.subr.mxu0 %v39
    %1285 = vmatpush1.msra.mxu0 %v38
    %1286 = vmatprep.subr.mxu0 %v43
    %1287 = vmatpush1.msra.mxu0 %v42
    %1288 = vmatprep.subr.mxu0 %v47
    %1289 = vmatpush1.msra.mxu0 %v46
    %1290 = vmatprep.subr.mxu0 %v51
    %1291 = vmatpush1.msra.mxu0 %v50
    %1292 = vmatprep.subr.mxu0 %v55
    %1293 = vmatpush1.msra.mxu0 %v54
    %1294 = vmatprep.subr.mxu0 %v59
    %1295 = vmatpush1.msra.mxu0 %v58
    %1296 = vmatprep.subr.mxu0 %v63
    %1297 = vmatpush1.msra.mxu0 %v62
    %1298 = vmatprep.subr.mxu0 %v67
    %1299 = vmatpush1.msra.mxu0 %v66
    %1300 = vmatprep.subr.mxu0 %v71
    %1301 = vmatpush1.msra.mxu0 %v70
    %1302 = vmatprep.subr.mxu0 %v75
    %1303 = vmatpush1.msra.mxu0 %v74
    %1304 = vmatprep.subr.mxu0 %v79
    %1305 = vmatpush1.msra.mxu0 %v78
    %1306 = vmatprep.subr.mxu0 %v83
    %1307 = vmatpush1.msra.mxu0 %v82
    %1308 = vmatprep.subr.mxu0 %v87
    %1309 = vmatpush1.msra.mxu0 %v86
    %1310 = vmatprep.subr.mxu0 %v91
    %1311 = vmatpush1.msra.mxu0 %v90
    %1312 = vmatprep.subr.mxu0 %v95
    %1313 = vmatpush1.msra.mxu0 %v94
    %1314 = vmatprep.subr.mxu0 %v99
    %1315 = vmatpush1.msra.mxu0 %v98
    %1316 = vmatprep.subr.mxu0 %v103
    %1317 = vmatpush1.msra.mxu0 %v102
    %1318 = vmatprep.subr.mxu0 %v107
    %1319 = vmatpush1.msra.mxu0 %v106
    %1320 = vmatprep.subr.mxu0 %v111
    %1321 = vmatpush1.msra.mxu0 %v110
    %1322 = vmatprep.subr.mxu0 %v115
    %1323 = vmatpush1.msra.mxu0 %v114
    %1324 = vmatprep.subr.mxu0 %v119
    %1325 = vmatpush1.msra.mxu0 %v118
    %1326 = vmatprep.subr.mxu0 %v123
    %1327 = vmatpush1.msra.mxu0 %v122
    %1328 = vmatprep.subr.mxu0 %v127
    %1329 = vmatpush1.msra.mxu0 %v126
    %1330 = vmatprep.subr.mxu0 %v131
    %1331 = vmatpush1.msra.mxu0 %v130
    %1332 = vmatprep.subr.mxu0 %v135
    %1333 = vmatpush1.msra.mxu0 %v134
    %1334 = vmatprep.subr.mxu0 %v139
    %1335 = vmatpush1.msra.mxu0 %v138
    %1336 = vmatprep.subr.mxu0 %v143
    %1337 = vmatpush1.msra.mxu0 %v142
    %1338 = vmatprep.subr.mxu0 %v147
    %1339 = vmatpush1.msra.mxu0 %v146
    %1340 = vmatprep.subr.mxu0 %v151
    %1341 = vmatpush1.msra.mxu0 %v150
    %1342 = vmatprep.subr.mxu0 %v155
    %1343 = vmatpush1.msra.mxu0 %v154
    %1344 = vmatprep.subr.mxu0 %v159
    %1345 = vmatpush1.msra.mxu0 %v158
    %1346 = vmatprep.mubr.f32.mxu0 %v1281
    %1347 = vmatmul.mubr.f32.gmra.mrb[0].mxu0 %v33
    %v1348 = vpop.f32.mrb[0].mxu0
    %v1349 = vadd.f32 %v166, %v1348
    %v1350 = vpop.f32.mrb[0].mxu0
    %v1351 = vadd.f32 %v170, %v1350
    %1352 = vdwg.mxu0
    %1353 = vmatprep.subr.mxu0 %v37
    %1354 = vmatpush1.msra.mxu0 %v36
    %1355 = vmatprep.subr.mxu0 %v41
    %1356 = vmatpush1.msra.mxu0 %v40
    %1357 = vmatprep.subr.mxu0 %v45
    %1358 = vmatpush1.msra.mxu0 %v44
    %1359 = vmatprep.subr.mxu0 %v49
    %1360 = vmatpush1.msra.mxu0 %v48
    %1361 = vmatprep.subr.mxu0 %v53
    %1362 = vmatpush1.msra.mxu0 %v52
    %1363 = vmatprep.subr.mxu0 %v57
    %1364 = vmatpush1.msra.mxu0 %v56
    %1365 = vmatprep.subr.mxu0 %v61
    %1366 = vmatpush1.msra.mxu0 %v60
    %1367 = vmatprep.subr.mxu0 %v65
    %1368 = vmatpush1.msra.mxu0 %v64
    %1369 = vmatprep.subr.mxu0 %v69
    %1370 = vmatpush1.msra.mxu0 %v68
    %1371 = vmatprep.subr.mxu0 %v73
    %1372 = vmatpush1.msra.mxu0 %v72
    %1373 = vmatprep.subr.mxu0 %v77
    %1374 = vmatpush1.msra.mxu0 %v76
    %1375 = vmatprep.subr.mxu0 %v81
    %1376 = vmatpush1.msra.mxu0 %v80
    %1377 = vmatprep.subr.mxu0 %v85
    %1378 = vmatpush1.msra.mxu0 %v84
    %1379 = vmatprep.subr.mxu0 %v89
    %1380 = vmatpush1.msra.mxu0 %v88
    %1381 = vmatprep.subr.mxu0 %v93
    %1382 = vmatpush1.msra.mxu0 %v92
    %1383 = vmatprep.subr.mxu0 %v97
    %1384 = vmatpush1.msra.mxu0 %v96
    %1385 = vmatprep.subr.mxu0 %v101
    %1386 = vmatpush1.msra.mxu0 %v100
    %1387 = vmatprep.subr.mxu0 %v105
    %1388 = vmatpush1.msra.mxu0 %v104
    %1389 = vmatprep.subr.mxu0 %v109
    %1390 = vmatpush1.msra.mxu0 %v108
    %1391 = vmatprep.subr.mxu0 %v113
    %1392 = vmatpush1.msra.mxu0 %v112
    %1393 = vmatprep.subr.mxu0 %v117
    %1394 = vmatpush1.msra.mxu0 %v116
    %1395 = vmatprep.subr.mxu0 %v121
    %1396 = vmatpush1.msra.mxu0 %v120
    %1397 = vmatprep.subr.mxu0 %v125
    %1398 = vmatpush1.msra.mxu0 %v124
    %1399 = vmatprep.subr.mxu0 %v129
    %1400 = vmatpush1.msra.mxu0 %v128
    %1401 = vmatprep.subr.mxu0 %v133
    %1402 = vmatpush1.msra.mxu0 %v132
    %1403 = vmatprep.subr.mxu0 %v137
    %1404 = vmatpush1.msra.mxu0 %v136
    %1405 = vmatprep.subr.mxu0 %v141
    %1406 = vmatpush1.msra.mxu0 %v140
    %1407 = vmatprep.subr.mxu0 %v145
    %1408 = vmatpush1.msra.mxu0 %v144
    %1409 = vmatprep.subr.mxu0 %v149
    %1410 = vmatpush1.msra.mxu0 %v148
    %1411 = vmatprep.subr.mxu0 %v153
    %1412 = vmatpush1.msra.mxu0 %v152
    %1413 = vmatprep.subr.mxu0 %v157
    %1414 = vmatpush1.msra.mxu0 %v156
    %1415 = vmatprep.subr.mxu0 %v161
    %1416 = vmatpush1.msra.mxu0 %v160
    %1417 = vmatprep.mubr.f32.mxu0 %v1281
    %1418 = vmatmul.mubr.f32.gmra.mrb[0].mxu0 %v33
    %v1419 = vpop.f32.mrb[0].mxu0
    %v1420 = vadd.f32 %v174, %v1419
    %v1421 = vpop.f32.mrb[0].mxu0
    %v1422 = vadd.f32 %v178, %v1421
    %1423 = vdwg.mxu0
    %v1424 = vtanh.pop %v1349
    %v1425 = vtanh.pop %v1351
    %v1426 = vtanh.pop %v1420
    %v1427 = vtanh.pop %v1422
    %v1428 = vadd.f32 %v1424, 1.0
    %v1429 = vmul.f32 %v1428, 0.5
    %v1430 = vadd.f32 %v1425, 1.0
    %v1431 = vmul.f32 %v1430, 0.5
    %v1432 = vadd.f32 %v1427, 1.0
    %v1433 = vmul.f32 %v1432, 0.5
    %v1434 = vmul.f32 %v1431, %v1279
    %v1435 = vmul.f32 %v1429, %v1426
    %v1436 = vadd.f32 %v1434, %v1435
    %v1437 = vtanh.pop %v1436
    %v1438 = vmul.f32 %v1433, %v1437
    %v1440 = vrot.slane %v496, 7
    %v1443 = vrot.slane %v653, 6
    %v1446 = vrot.slane %v810, 5
    %v1449 = vrot.slane %v967, 4
    %v1452 = vrot.slane %v1124, 3
    %v1455 = vrot.slane %v1281, 2
    %v1458 = vrot.slane %v1438, 1
    %vm1460 = vcmask 1040384
    %v1461 = vsel %vm1460, %v339, %v1440
    %vm1462 = vcmask 1041408
    %v1463 = vsel %vm1462, %v1461, %v1443
    %vm1464 = vcmask 1042432
    %v1465 = vsel %vm1464, %v1463, %v1446
    %vm1466 = vcmask 1043456
    %v1467 = vsel %vm1466, %v1465, %v1449
    %vm1468 = vcmask 1044480
    %v1469 = vsel %vm1468, %v1467, %v1452
    %vm1470 = vcmask 1045504
    %v1471 = vsel %vm1470, %v1469, %v1455
    %vm1472 = vcmask 1046528
    %v1473 = vsel %vm1472, %v1471, %v1458
    %v1474 = vld [vmem:[%s2 + $0x1] sm:$0x1]
    %v1475 = vlaneseq
    %v1476 = vshrl.u32 %v1475, 7
    %v1477 = vsub.s32 0, %v1476
    %v1478 = vrot.slane %v1474, %v1477
    %v1479 = vmul.f32 %v1473, %v1478
    %1480 = vadd.xlane.f32.xlu0 %v1479
    %v1481 = vpop.xlane.xlu0 %1480
    %s1482 = sld [smem:[#allocation2]]
    %v1483 = vstv %s1482
    %v1484 = vadd.f32 %v1481, %v1483
    %vm1485 = vcmask 7168
    %1486 = vst.msk [vmem:[%s4] sm:$0xff] %vm1485, %v1484
    // Predicated region
    $region22: #{tpu_custom_call.1} parent=1 // pred_check
      _
    $region23: #{tpu_custom_call.1} parent=1 // pred_check_branch
      %1488 = sbr.rel (0) target = $region25
    $region24: #{tpu_custom_call.1} parent=1 // pred_region
      _
    $region25: #{tpu_custom_call.1} parent=1 // pred_fallthru
      _
    // Predicated region
    $region26: #{tpu_custom_call.1} parent=1 // pred_check
      _
    $region27: #{tpu_custom_call.1} parent=1 // pred_check_branch
      %1490 = sbr.rel (0) target = $region29
    $region28: #{tpu_custom_call.1} parent=1 // pred_region
      _
    $region29: #{tpu_custom_call.1} parent=1 // pred_fallthru
      _
    %1491 = vsyncpa [#allocation4], 1

</llo_original>
